<compile_context>
chip_gen: v6e
topology: v6e:2x2x1
jax: 0.10.0
libtpu: 0.0.40
codegen_flags: <defaults>
</compile_context>

<pallas_src>
import numpy as np
import jax
import jax.numpy as jnp
from jax import lax
from jax.experimental import pallas as pl
from jax.experimental.pallas import tpu as pltpu

HIDDEN = 32                    # hidden_dim
IN_CH = 9                      # backbone input channels
SPATIAL = 9                    # 3x3 board positions
OUT_ACTIONS = 81               # np.prod(out_shape) for depth-2 ultimateTTT
FEAT = IN_CH * SPATIAL         # 81  flattened single-plane features
IN_FLAT = FEAT * 2             # 162 natural flatten of (3,3,9,2) per sample
HFEAT = HIDDEN * SPATIAL       # 288 flattened backbone features
HEAD_H = 64                    # head hidden width
HEAD_W = 128                   # fused head width (2*HEAD_H, also MXU lane width)


def _round_up(x, m):
    return ((x + m - 1) // m) * m


# ---------------------------------------------------------------------------
# Dense-matrix construction for the tiny convs (host-side glue, numpy).
# ---------------------------------------------------------------------------
def _conv1x1_dense(w):  # w: (Cout, Cin, 1, 1) -> (Cin*9, Cout*9)
    cout, cin = w.shape[0], w.shape[1]
    m = np.zeros((cin, SPATIAL, cout, SPATIAL), dtype=np.float32)
    for p in range(SPATIAL):
        m[:, p, :, p] = w[:, :, 0, 0].T
    return m.reshape(cin * SPATIAL, cout * SPATIAL)


def _conv3x3_dense(w):  # w: (Cout, Cin, 3, 3), pad=1 on a 3x3 grid -> (Cin*9, Cout*9)
    cout, cin = w.shape[0], w.shape[1]
    m = np.zeros((cin, SPATIAL, cout, SPATIAL), dtype=np.float32)
    for i in range(3):
        for j in range(3):
            p = i * 3 + j
            for ki in range(3):
                for kj in range(3):
                    ii, jj = i + ki - 1, j + kj - 1
                    if 0 <= ii < 3 and 0 <= jj < 3:
                        q = ii * 3 + jj
                        m[:, q, :, p] += w[:, :, ki, kj].T
    return m.reshape(cin * SPATIAL, cout * SPATIAL)


def _bias_flat(b):  # (C,) -> (C*9,), same c*9+p flatten order
    return np.repeat(np.asarray(b, np.float32), SPATIAL)


# ---------------------------------------------------------------------------
# The Pallas kernel: full forward pass for one batch tile.
# ---------------------------------------------------------------------------
def _dueling_kernel(x_ref, m1_ref, mbb_ref, whead_ref, bias_ref, out_ref):
    def dense(h, w_bf16, b_f32, relu=True):
        # bf16 MXU operands, f32 accumulation; bias/ReLU stay f32 on the VPU.
        y = jnp.dot(h.astype(jnp.bfloat16), w_bf16,
                    preferred_element_type=jnp.float32) + b_f32
        return jnp.maximum(y, 0.0) if relu else y

    # Backbone: Conv(9->32,k1), Conv(32->32,k1), 3x Conv(32->32,k3,p1), all +ReLU,
    # as dense matmuls on the flattened layout.  m1 also folds in the NCHW
    # permutation and the plane0 - plane1 subtraction (x_ref is the raw (TB,162)).
    h = dense(x_ref[...], m1_ref[...], bias_ref[0:1, :])          # (TB, 288)
    for k in range(4):
        h = dense(h, mbb_ref[k], bias_ref[k + 1:k + 2, :])        # (TB, 288)

    # Fused dueling heads.
    # layer 1: columns 0:64 = value hidden, 64:128 = advantage hidden.
    hh = dense(h, whead_ref[0:HFEAT, :], bias_ref[5:6, 0:HEAD_W])             # (TB, 128)
    # layer 2: the dueling combine V + A - mean(A) is folded into the weights,
    # so cols 0:81 are the Q-values directly; cols 81:128 are don't-care.
    out_ref[...] = dense(hh, whead_ref[HFEAT:HFEAT + HEAD_W, :],
                         bias_ref[6:7, 0:HEAD_W], relu=False)                 # (TB, 128)


# ---------------------------------------------------------------------------
# Host-side wrapper: tile selection + pallas_call (no transpose/stack XLA ops).
# ---------------------------------------------------------------------------
def _choose_tile(batch, tile_b):
    tile_b = max(8, _round_up(tile_b, 8))
    n_steps = -(-batch // tile_b)
    # v7x megacore: prefer >=2 grid steps so both TensorCores get work
    # (the batch axis is tagged "parallel"); don't bother splitting tiny batches.
    if n_steps < 2 and batch > 8:
        n_steps = 2
    tb = max(8, _round_up(-(-batch // n_steps), 8))
    bp = _round_up(batch, tb)
    return tb, bp


def dueling_dqn_conv_forward(x, kparams, *, tile_b=2048):
    """x: (B, 3, 3, 9, 2) float32; kparams = (m1, m_bb, w_head, biases).

    tile_b is the batch-tile upper bound.  Production callers should keep it
    >= 256 (default 2048) so per-grid-step overhead stays well under the MXU
    work; tiny values (e.g. 8) are only for correctness tests.
    """
    m1, m_bb, w_head, biases = kparams
    B = x.shape[0]
    # Free reshape only: the permutation/subtraction live in m1.
    xf = x.reshape(B, IN_FLAT).astype(jnp.float32)                # (B, 162)

    tb, bp = _choose_tile(B, tile_b)
    if bp != B:
        xf = jnp.pad(xf, ((0, bp - B), (0, 0)))
    grid = (bp // tb,)

    flops = 2 * bp * (IN_FLAT * HFEAT + 4 * HFEAT * HFEAT
                      + HFEAT * HEAD_W + HEAD_W * HEAD_W)
    bytes_accessed = (bp * IN_FLAT * 4 + bp * HEAD_W * 4
                      + m1.size * 2 + m_bb.size * 2 + w_head.size * 2
                      + biases.size * 4)

    out = pl.pallas_call(
        _dueling_kernel,
        grid=grid,
        in_specs=[
            pl.BlockSpec((tb, IN_FLAT), lambda i: (i, 0)),        # activations: batch-tiled
            pl.BlockSpec(m1.shape, lambda i: (0, 0)),             # weights: VMEM-resident
            pl.BlockSpec(m_bb.shape, lambda i: (0, 0, 0)),
            pl.BlockSpec(w_head.shape, lambda i: (0, 0)),
            pl.BlockSpec(biases.shape, lambda i: (0, 0)),
        ],
        out_specs=pl.BlockSpec((tb, HEAD_W), lambda i: (i, 0)),   # lane-dense 128-wide
        out_shape=jax.ShapeDtypeStruct((bp, HEAD_W), jnp.float32),
        compiler_params=pltpu.CompilerParams(
            dimension_semantics=("parallel",),                    # shards batch on v7x's 2 TCs
            vmem_limit_bytes=32 * 1024 * 1024),                   # footprint is a few MiB; plenty
        cost_estimate=pl.CostEstimate(flops=flops, transcendentals=0,
                                      bytes_accessed=bytes_accessed),
    )(xf, m1, m_bb, w_head, biases)

    # NOTE: consumers that can accept the padded lane-dense (bp, 128) layout
    # (or bf16 Q-values) should read `out` directly and skip this slice.
    return out[:B, :OUT_ACTIONS]


# ---------------------------------------------------------------------------
# Deterministic parameter init (torch-shaped), then packing to kernel params.
# ---------------------------------------------------------------------------
def init_raw_params(key):
    ks = jax.random.split(key, 18)

    def u(k, shape, fan_in):
        bound = 1.0 / np.sqrt(fan_in)
        return jax.random.uniform(k, shape, jnp.float32, -bound, bound)

    raw = dict(
        w1=u(ks[0], (HIDDEN, IN_CH, 1, 1), IN_CH),       b1=u(ks[1], (HIDDEN,), IN_CH),
        w2=u(ks[2], (HIDDEN, HIDDEN, 1, 1), HIDDEN),     b2=u(ks[3], (HIDDEN,), HIDDEN),
        w3=u(ks[4], (HIDDEN, HIDDEN, 3, 3), HIDDEN * 9), b3=u(ks[5], (HIDDEN,), HIDDEN * 9),
        w4=u(ks[6], (HIDDEN, HIDDEN, 3, 3), HIDDEN * 9), b4=u(ks[7], (HIDDEN,), HIDDEN * 9),
        w5=u(ks[8], (HIDDEN, HIDDEN, 3, 3), HIDDEN * 9), b5=u(ks[9], (HIDDEN,), HIDDEN * 9),
        wv1=u(ks[10], (HEAD_H, HFEAT), HFEAT),           bv1=u(ks[11], (HEAD_H,), HFEAT),
        wv2=u(ks[12], (1, HEAD_H), HEAD_H),              bv2=u(ks[13], (1,), HEAD_H),
        wa1=u(ks[14], (HEAD_H, HFEAT), HFEAT),           ba1=u(ks[15], (HEAD_H,), HFEAT),
        wa2=u(ks[16], (OUT_ACTIONS, HEAD_H), HEAD_H),    ba2=u(ks[17], (OUT_ACTIONS,), HEAD_H),
    )
    return raw


def build_kernel_params(raw):
    g = lambda n: np.asarray(raw[n], np.float32)

    # First layer: conv1x1 dense (81, 288) on the c*9+p layout, then fold in the
    # NCHW permutation and the plane0 - plane1 subtraction so the input row index
    # matches x.reshape(B, 162) directly (row = p*18 + c*2 + plane):
    #   plane 0 -> +W,  plane 1 -> -W.
    m1_cp = _conv1x1_dense(g('w1'))                                  # (81, 288), row = c*9+p
    m1_pc = m1_cp.reshape(IN_CH, SPATIAL, HFEAT).transpose(1, 0, 2)  # (p, c, 288)
    m1 = np.stack([m1_pc, -m1_pc], axis=2).reshape(IN_FLAT, HFEAT)   # (162, 288)

    # Remaining backbone dense matrices.
    m_bb = np.stack([_conv1x1_dense(g('w2')),
                     _conv3x3_dense(g('w3')),
                     _conv3x3_dense(g('w4')),
                     _conv3x3_dense(g('w5'))], axis=0)               # (4, 288, 288)

    # Fused head layer 1: [wv1.T | wa1.T] -> (288, 128).
    wh1 = np.concatenate([g('wv1').T, g('wa1').T], axis=1)

    # Fused head layer 2 with the dueling combine folded in:
    #   Q = V + A - mean(A)
    #     = hh_v @ wv2 (broadcast to all 81 cols)
    #       + hh_a @ (wa2.T - mean_over_actions(wa2.T))
    #       + (ba2 - mean(ba2) + bv2)
    wa2_t = g('wa2').T                                               # (64, 81)
    wh2 = np.zeros((HEAD_W, HEAD_W), np.float32)
    wh2[0:HEAD_H, 0:OUT_ACTIONS] = g('wv2')[0, :][:, None]           # value path, broadcast
    wh2[HEAD_H:HEAD_W, 0:OUT_ACTIONS] = wa2_t - wa2_t.mean(axis=1, keepdims=True)
    w_head = np.concatenate([wh1, wh2], axis=0)                      # (416, 128)

    # Bias blob: rows 0-4 backbone (288-wide), row 5 head1, row 6 fused head2 (128-wide).
    biases = np.zeros((8, HFEAT), np.float32)
    biases[0, :] = _bias_flat(g('b1'))
    biases[1, :] = _bias_flat(g('b2'))
    biases[2, :] = _bias_flat(g('b3'))
    biases[3, :] = _bias_flat(g('b4'))
    biases[4, :] = _bias_flat(g('b5'))
    biases[5, 0:HEAD_H] = g('bv1')
    biases[5, HEAD_H:HEAD_W] = g('ba1')
    biases[6, 0:OUT_ACTIONS] = g('ba2') - g('ba2').mean() + g('bv2')[0]

    return (jnp.asarray(m1, jnp.bfloat16),
            jnp.asarray(m_bb, jnp.bfloat16),
            jnp.asarray(w_head, jnp.bfloat16),
            jnp.asarray(biases, jnp.float32))


# ---------------------------------------------------------------------------
# Pure-JAX reference (matches the PyTorch forward op-for-op, f32 HIGHEST).
# ---------------------------------------------------------------------------
def reference_forward(x, raw):
    hp = lax.Precision.HIGHEST
    d = x[..., 0] - x[..., 1]
    d = d.reshape(-1, 3, 3, 9).transpose(0, 3, 1, 2)              # NCHW (B, 9, 3, 3)

    def conv(h, w, b, pad):
        y = lax.conv_general_dilated(h, w, (1, 1), [(pad, pad), (pad, pad)],
                                     dimension_numbers=('NCHW', 'OIHW', 'NCHW'),
                                     precision=hp)
        return jax.nn.relu(y + b[None, :, None, None])

    h = conv(d, raw['w1'], raw['b1'], 0)
    h = conv(h, raw['w2'], raw['b2'], 0)
    h = conv(h, raw['w3'], raw['b3'], 1)
    h = conv(h, raw['w4'], raw['b4'], 1)
    h = conv(h, raw['w5'], raw['b5'], 1)
    h = h.reshape(h.shape[0], -1)                                 # (B, 288)

    v = jnp.dot(jax.nn.relu(jnp.dot(h, raw['wv1'].T, precision=hp) + raw['bv1']),
                raw['wv2'].T, precision=hp) + raw['bv2']
    a = jnp.dot(jax.nn.relu(jnp.dot(h, raw['wa1'].T, precision=hp) + raw['ba1']),
                raw['wa2'].T, precision=hp) + raw['ba2']
    out = v + a - jnp.mean(a, axis=-1, keepdims=True)
    return out.reshape(-1, OUT_ACTIONS)


if __name__ == "__main__":
    key = jax.random.PRNGKey(0)
    kx, kp = jax.random.split(key)

    B = 32
    x = jax.random.normal(kx, (B, 3, 3, 9, 2), jnp.float32)

    raw = init_raw_params(kp)
    kparams = build_kernel_params(raw)

    ref = jax.block_until_ready(reference_forward(x, raw))

    # tile_b=8 -> 4-step batch grid: exercises the pipelined / parallel path.
    out_small = jax.block_until_ready(dueling_dqn_conv_forward(x, kparams, tile_b=8))
    # default tile -> auto-split into 2 even steps (v7x megacore sizing path).
    out_default = jax.block_until_ready(dueling_dqn_conv_forward(x, kparams))

    assert out_small.shape == (B, OUT_ACTIONS)
    assert out_default.shape == (B, OUT_ACTIONS)
    np.testing.assert_allclose(np.asarray(out_small), np.asarray(ref), rtol=3e-2, atol=3e-2)
    np.testing.assert_allclose(np.asarray(out_default), np.asarray(ref), rtol=3e-2, atol=3e-2)
    print("KERNEL_OK")
</pallas_src>

<mosaic_0001>
module attributes {stable_mosaic.version = 11 : i64} {
  func.func @_dueling_kernel(%arg0: i32, %arg1: memref<8x162xf32, #tpu.memory_space<vmem>>, %arg2: memref<162x288xbf16, #tpu.memory_space<vmem>>, %arg3: memref<4x288x288xbf16, #tpu.memory_space<vmem>>, %arg4: memref<416x128xbf16, #tpu.memory_space<vmem>>, %arg5: memref<8x288xf32, #tpu.memory_space<vmem>>, %arg6: memref<8x128xf32, #tpu.memory_space<vmem>>) attributes {dimension_semantics = [#tpu.dimension_semantics<parallel>], iteration_bounds = array<i64: 4>, scalar_prefetch = 0 : i64, scratch_operands = 0 : i64, tpu.core_type = #tpu.core_type<tc>, window_params = [{transform_indices = @transform_0, window_bounds = array<i64: 8, 162>}, {pipeline_mode = #tpu.pipeline_mode<synchronous>, transform_indices = @transform_1, window_bounds = array<i64: 162, 288>}, {pipeline_mode = #tpu.pipeline_mode<synchronous>, transform_indices = @transform_2, window_bounds = array<i64: 4, 288, 288>}, {pipeline_mode = #tpu.pipeline_mode<synchronous>, transform_indices = @transform_3, window_bounds = array<i64: 416, 128>}, {pipeline_mode = #tpu.pipeline_mode<synchronous>, transform_indices = @transform_4, window_bounds = array<i64: 8, 288>}, {transform_indices = @transform_5, window_bounds = array<i64: 8, 128>}]} {
    %c0 = arith.constant 0 : index
    %c0_0 = arith.constant 0 : index
    %0 = vector.load %arg1[%c0, %c0_0] : memref<8x162xf32, #tpu.memory_space<vmem>>, vector<8x162xf32>
    %c0_1 = arith.constant 0 : index
    %c0_2 = arith.constant 0 : index
    %1 = vector.load %arg2[%c0_1, %c0_2] : memref<162x288xbf16, #tpu.memory_space<vmem>>, vector<162x288xbf16>
    %c0_3 = arith.constant 0 : index
    %c0_4 = arith.constant 0 : index
    %2 = vector.load %arg5[%c0_3, %c0_4] : memref<8x288xf32, #tpu.memory_space<vmem>>, vector<1x288xf32>
    %3 = arith.truncf %0 : vector<8x162xf32> to vector<8x162xbf16>
    %cst = arith.constant dense<0.000000e+00> : vector<8x288xf32>
    %4 = tpu.matmul %3, %1, %cst {dimension_numbers = #tpu.dot_dimension_numbers<[1], [0], [0], [1], [0, 0, 1, 1], [], []>} : vector<8x162xbf16>, vector<162x288xbf16>, vector<8x288xf32> -> vector<8x288xf32>
    %5 = vector.broadcast %2 : vector<1x288xf32> to vector<8x288xf32>
    %6 = arith.addf %4, %5 : vector<8x288xf32>
    %cst_5 = arith.constant 0.000000e+00 : f32
    %7 = vector.broadcast %cst_5 : f32 to vector<8x288xf32>
    %8 = arith.maximumf %6, %7 : vector<8x288xf32>
    %c0_6 = arith.constant 0 : index
    %c0_7 = arith.constant 0 : index
    %c0_8 = arith.constant 0 : index
    %9 = vector.load %arg3[%c0_6, %c0_7, %c0_8] : memref<4x288x288xbf16, #tpu.memory_space<vmem>>, vector<1x288x288xbf16>
    %10 = vector.shape_cast %9 : vector<1x288x288xbf16> to vector<288x288xbf16>
    %c1 = arith.constant 1 : index
    %c0_9 = arith.constant 0 : index
    %11 = vector.load %arg5[%c1, %c0_9] : memref<8x288xf32, #tpu.memory_space<vmem>>, vector<1x288xf32>
    %12 = arith.truncf %8 : vector<8x288xf32> to vector<8x288xbf16>
    %cst_10 = arith.constant dense<0.000000e+00> : vector<8x288xf32>
    %13 = tpu.matmul %12, %10, %cst_10 {dimension_numbers = #tpu.dot_dimension_numbers<[1], [0], [0], [1], [0, 0, 1, 1], [], []>} : vector<8x288xbf16>, vector<288x288xbf16>, vector<8x288xf32> -> vector<8x288xf32>
    %14 = vector.broadcast %11 : vector<1x288xf32> to vector<8x288xf32>
    %15 = arith.addf %13, %14 : vector<8x288xf32>
    %cst_11 = arith.constant 0.000000e+00 : f32
    %16 = vector.broadcast %cst_11 : f32 to vector<8x288xf32>
    %17 = arith.maximumf %15, %16 : vector<8x288xf32>
    %c1_12 = arith.constant 1 : index
    %c0_13 = arith.constant 0 : index
    %c0_14 = arith.constant 0 : index
    %18 = vector.load %arg3[%c1_12, %c0_13, %c0_14] : memref<4x288x288xbf16, #tpu.memory_space<vmem>>, vector<1x288x288xbf16>
    %19 = vector.shape_cast %18 : vector<1x288x288xbf16> to vector<288x288xbf16>
    %c2 = arith.constant 2 : index
    %c0_15 = arith.constant 0 : index
    %20 = vector.load %arg5[%c2, %c0_15] : memref<8x288xf32, #tpu.memory_space<vmem>>, vector<1x288xf32>
    %21 = arith.truncf %17 : vector<8x288xf32> to vector<8x288xbf16>
    %cst_16 = arith.constant dense<0.000000e+00> : vector<8x288xf32>
    %22 = tpu.matmul %21, %19, %cst_16 {dimension_numbers = #tpu.dot_dimension_numbers<[1], [0], [0], [1], [0, 0, 1, 1], [], []>} : vector<8x288xbf16>, vector<288x288xbf16>, vector<8x288xf32> -> vector<8x288xf32>
    %23 = vector.broadcast %20 : vector<1x288xf32> to vector<8x288xf32>
    %24 = arith.addf %22, %23 : vector<8x288xf32>
    %cst_17 = arith.constant 0.000000e+00 : f32
    %25 = vector.broadcast %cst_17 : f32 to vector<8x288xf32>
    %26 = arith.maximumf %24, %25 : vector<8x288xf32>
    %c2_18 = arith.constant 2 : index
    %c0_19 = arith.constant 0 : index
    %c0_20 = arith.constant 0 : index
    %27 = vector.load %arg3[%c2_18, %c0_19, %c0_20] : memref<4x288x288xbf16, #tpu.memory_space<vmem>>, vector<1x288x288xbf16>
    %28 = vector.shape_cast %27 : vector<1x288x288xbf16> to vector<288x288xbf16>
    %c3 = arith.constant 3 : index
    %c0_21 = arith.constant 0 : index
    %29 = vector.load %arg5[%c3, %c0_21] : memref<8x288xf32, #tpu.memory_space<vmem>>, vector<1x288xf32>
    %30 = arith.truncf %26 : vector<8x288xf32> to vector<8x288xbf16>
    %cst_22 = arith.constant dense<0.000000e+00> : vector<8x288xf32>
    %31 = tpu.matmul %30, %28, %cst_22 {dimension_numbers = #tpu.dot_dimension_numbers<[1], [0], [0], [1], [0, 0, 1, 1], [], []>} : vector<8x288xbf16>, vector<288x288xbf16>, vector<8x288xf32> -> vector<8x288xf32>
    %32 = vector.broadcast %29 : vector<1x288xf32> to vector<8x288xf32>
    %33 = arith.addf %31, %32 : vector<8x288xf32>
    %cst_23 = arith.constant 0.000000e+00 : f32
    %34 = vector.broadcast %cst_23 : f32 to vector<8x288xf32>
    %35 = arith.maximumf %33, %34 : vector<8x288xf32>
    %c3_24 = arith.constant 3 : index
    %c0_25 = arith.constant 0 : index
    %c0_26 = arith.constant 0 : index
    %36 = vector.load %arg3[%c3_24, %c0_25, %c0_26] : memref<4x288x288xbf16, #tpu.memory_space<vmem>>, vector<1x288x288xbf16>
    %37 = vector.shape_cast %36 : vector<1x288x288xbf16> to vector<288x288xbf16>
    %c4 = arith.constant 4 : index
    %c0_27 = arith.constant 0 : index
    %38 = vector.load %arg5[%c4, %c0_27] : memref<8x288xf32, #tpu.memory_space<vmem>>, vector<1x288xf32>
    %39 = arith.truncf %35 : vector<8x288xf32> to vector<8x288xbf16>
    %cst_28 = arith.constant dense<0.000000e+00> : vector<8x288xf32>
    %40 = tpu.matmul %39, %37, %cst_28 {dimension_numbers = #tpu.dot_dimension_numbers<[1], [0], [0], [1], [0, 0, 1, 1], [], []>} : vector<8x288xbf16>, vector<288x288xbf16>, vector<8x288xf32> -> vector<8x288xf32>
    %41 = vector.broadcast %38 : vector<1x288xf32> to vector<8x288xf32>
    %42 = arith.addf %40, %41 : vector<8x288xf32>
    %cst_29 = arith.constant 0.000000e+00 : f32
    %43 = vector.broadcast %cst_29 : f32 to vector<8x288xf32>
    %44 = arith.maximumf %42, %43 : vector<8x288xf32>
    %c0_30 = arith.constant 0 : index
    %c0_31 = arith.constant 0 : index
    %45 = vector.load %arg4[%c0_30, %c0_31] : memref<416x128xbf16, #tpu.memory_space<vmem>>, vector<288x128xbf16>
    %c5 = arith.constant 5 : index
    %c0_32 = arith.constant 0 : index
    %46 = vector.load %arg5[%c5, %c0_32] : memref<8x288xf32, #tpu.memory_space<vmem>>, vector<1x128xf32>
    %47 = arith.truncf %44 : vector<8x288xf32> to vector<8x288xbf16>
    %cst_33 = arith.constant dense<0.000000e+00> : vector<8x128xf32>
    %48 = tpu.matmul %47, %45, %cst_33 {dimension_numbers = #tpu.dot_dimension_numbers<[1], [0], [0], [1], [0, 0, 1, 1], [], []>} : vector<8x288xbf16>, vector<288x128xbf16>, vector<8x128xf32> -> vector<8x128xf32>
    %49 = vector.broadcast %46 : vector<1x128xf32> to vector<8x128xf32>
    %50 = arith.addf %48, %49 : vector<8x128xf32>
    %cst_34 = arith.constant 0.000000e+00 : f32
    %51 = vector.broadcast %cst_34 : f32 to vector<8x128xf32>
    %52 = arith.maximumf %50, %51 : vector<8x128xf32>
    %c288 = arith.constant 288 : index
    %c0_35 = arith.constant 0 : index
    %53 = vector.load %arg4[%c288, %c0_35] : memref<416x128xbf16, #tpu.memory_space<vmem>>, vector<128x128xbf16>
    %c6 = arith.constant 6 : index
    %c0_36 = arith.constant 0 : index
    %54 = vector.load %arg5[%c6, %c0_36] : memref<8x288xf32, #tpu.memory_space<vmem>>, vector<1x128xf32>
    %55 = arith.truncf %52 : vector<8x128xf32> to vector<8x128xbf16>
    %cst_37 = arith.constant dense<0.000000e+00> : vector<8x128xf32>
    %56 = tpu.matmul %55, %53, %cst_37 {dimension_numbers = #tpu.dot_dimension_numbers<[1], [0], [0], [1], [0, 0, 1, 1], [], []>} : vector<8x128xbf16>, vector<128x128xbf16>, vector<8x128xf32> -> vector<8x128xf32>
    %57 = vector.broadcast %54 : vector<1x128xf32> to vector<8x128xf32>
    %58 = arith.addf %56, %57 : vector<8x128xf32>
    %c0_38 = arith.constant 0 : index
    %c0_39 = arith.constant 0 : index
    %59 = vector.load %arg6[%c0_38, %c0_39] : memref<8x128xf32, #tpu.memory_space<vmem>>, vector<8x128xf32>
    tpu.vector_store %arg6[%c0_38, %c0_39], %58 {strides = array<i32>} : memref<8x128xf32, #tpu.memory_space<vmem>>, vector<8x128xf32>,
    return
  }
  func.func @transform_0(%arg0: i32) -> (i32, i32) {
    %c0_i32 = arith.constant 0 : i32
    %c0_i32_0 = arith.constant 0 : i32
    return %arg0, %c0_i32 : i32, i32
  }
  func.func @transform_1(%arg0: i32) -> (i32, i32) {
    %c0_i32 = arith.constant 0 : i32
    %c0_i32_0 = arith.constant 0 : i32
    %c0_i32_1 = arith.constant 0 : i32
    return %c0_i32, %c0_i32_0 : i32, i32
  }
  func.func @transform_2(%arg0: i32) -> (i32, i32, i32) {
    %c0_i32 = arith.constant 0 : i32
    %c0_i32_0 = arith.constant 0 : i32
    %c0_i32_1 = arith.constant 0 : i32
    %c0_i32_2 = arith.constant 0 : i32
    return %c0_i32, %c0_i32_0, %c0_i32_1 : i32, i32, i32
  }
  func.func @transform_3(%arg0: i32) -> (i32, i32) {
    %c0_i32 = arith.constant 0 : i32
    %c0_i32_0 = arith.constant 0 : i32
    %c0_i32_1 = arith.constant 0 : i32
    return %c0_i32, %c0_i32_0 : i32, i32
  }
  func.func @transform_4(%arg0: i32) -> (i32, i32) {
    %c0_i32 = arith.constant 0 : i32
    %c0_i32_0 = arith.constant 0 : i32
    %c0_i32_1 = arith.constant 0 : i32
    return %c0_i32, %c0_i32_0 : i32, i32
  }
  func.func @transform_5(%arg0: i32) -> (i32, i32) {
    %c0_i32 = arith.constant 0 : i32
    %c0_i32_0 = arith.constant 0 : i32
    return %arg0, %c0_i32 : i32, i32
  }
}

</mosaic_0001>

<llo_original>
// kernel: tpu_custom_call.1
$region0: #{tpu_custom_call.1}
  #allocation0 [shape = 'u32[]', space=smem, size = 0x4, offset = 0x4, fixed_abs, tag = 'smem constant byte address 0x4 - core index']
  #allocation1 [shape = 'u32[144,128]{1,0:T(1,128)}', space=vmem, size = 0x12000, scoped, tag = 'internal scratch']
  %s0 = inlined_call_operand.hbm [shape: f32[32,162], index: 0, kind: input, shape index: {}]
  %s1 = inlined_call_operand.hbm [shape: bf16[162,288], index: 1, kind: input, shape index: {}]
  %s2 = inlined_call_operand.hbm [shape: bf16[4,288,288], index: 2, kind: input, shape index: {}]
  %s3 = inlined_call_operand.hbm [shape: bf16[416,128], index: 3, kind: input, shape index: {}]
  %s4 = inlined_call_operand.hbm [shape: f32[8,288], index: 4, kind: input, shape index: {}]
  %s5 = inlined_call_operand.hbm [shape: f32[32,128], index: 5, kind: output, shape index: {}]
  %s6 = sld [smem:[#allocation0]]
  $region73: #{tpu_custom_call.1} parent=0
    _
  %s8 = ssub.s32 1, %s6
  %s9 = scalar_select 0, %s8, %s6
  $region1: #{tpu_custom_call.1} parent=0
    #allocation2 [shape = 'u8[16384]{0}', space=vmem, size = 0x4000, scoped, tag = 'input window, operand 0']
    #allocation3 [shape = 's32[2]{0}', space=sflag, size = 0x8, scoped, tag = 'scoped memory for tpu_custom_call.1']
    #allocation4 [shape = 's32[2]{0}', space=sflag, size = 0x8, scoped, tag = 'scoped memory for tpu_custom_call.1']
    #allocation5 [shape = 'u8[129024]{0}', space=vmem, size = 0x1f800, scoped, tag = 'input window, operand 1, single buffered']
    #allocation6 [shape = 's32[1]{0}', space=sflag, size = 0x4, scoped, tag = 'scoped memory for tpu_custom_call.1']
    #allocation7 [shape = 'u8[884736]{0}', space=vmem, size = 0xd8000, scoped, tag = 'input window, operand 2, single buffered']
    #allocation8 [shape = 'u8[106496]{0}', space=vmem, size = 0x1a000, scoped, tag = 'input window, operand 3, single buffered']
    #allocation9 [shape = 's32[1]{0}', space=sflag, size = 0x4, scoped, tag = 'scoped memory for tpu_custom_call.1']
    #allocation10 [shape = 'u8[12288]{0}', space=vmem, size = 0x3000, scoped, tag = 'input window, operand 4, single buffered']
    #allocation11 [shape = 'u8[8192]{0}', space=vmem, size = 0x2000, scoped, tag = 'output window, operand 0']
    %10 = vsyncpa [#allocation3], 0
    %s11 = scalar_lea.sflag [#allocation3], 1
    %12 = vsyncpa %s11, 0
    %13 = vsyncpa [#allocation6], 0
    %14 = vsyncpa [#allocation9], 0
    %15 = vsyncpa [#allocation4], 0
    %s16 = scalar_lea.sflag [#allocation4], 1
    %17 = vsyncpa %s16, 0
    loop: start=0, step=1, limit=6
    $region2: #{tpu_custom_call.1} parent=1 // loop_pre_header
      _
    $region3: #{tpu_custom_call.1} parent=1 // loop_header
      %s19 = sphi 0, %s23
      %p20 = scmp.ge.s32.totalorder %s19, 6
      %s29 = sphi 0, %s31
      %s32 = sphi 0, %s29
      %s33 = sphi 0, %s32
      %s49 = sphi 0, %s33
      %s53 = sphi 0, %s53
      %s55 = sphi 0, %s53
      %s56 = sphi 0, %s55
      %s70 = sphi 0, %s56
      %s74 = sphi 0, %s74
      %s76 = sphi 0, %s74
      %s77 = sphi 0, %s76
      %s91 = sphi 0, %s77
      %s95 = sphi 0, %s95
      %s97 = sphi 0, %s95
      %s98 = sphi 0, %s97
      %s112 = sphi 0, %s98
      %s116 = sphi 0, %s116
      %s118 = sphi 0, %s116
      %s119 = sphi 0, %s118
      %s133 = sphi 0, %s119
      %s139 = sphi 0, %s141
      %s142 = sphi 0, %s139
      %s143 = sphi 0, %s142
      %s159 = sphi 0, %s143
    $region4: #{tpu_custom_call.1} parent=1 // loop_header_branch
      %22 = sbr.rel (%p20) target = $region8
    $region5: #{tpu_custom_call.1} parent=1 // loop_body
      %s24 = ssub.s32 %s19, 1
      %s25 = ssub.s32 %s19, 2
      %s26 = sadd.s32 %s19, 1
      %s27 = ssub.s32 %s19, %s26
      %p28 = scmp.eq.s32.totalorder %s27, 0
      %s30 = sadd.s32 %s29, 1
      %s31 = scalar_select %p28, %s29, %s30
      %p34 = pneg %p28
      %p35 = scmp.eq.s32.totalorder %s19, 3
      %p36 = por %p34, %p35
      %p37 = scmp.ne.s32.totalorder %s29, %s32
      %p38 = scmp.eq.s32.totalorder %s19, 0
      %p39 = por %p37, %p38
      %p40 = scmp.ne.s32.totalorder %s29, %s32
      %p41 = scmp.eq.s32.totalorder %s24, 3
      %p42 = por %p40, %p41
      %p43 = scmp.ne.s32.totalorder %s32, %s33
      %p44 = scmp.eq.s32.totalorder %s24, 0
      %p45 = por %p43, %p44
      %p46 = scmp.ne.s32.totalorder %s32, %s33
      %p47 = scmp.eq.s32.totalorder %s25, 3
      %p48 = por %p46, %p47
      %p50 = scmp.ne.s32.totalorder %s33, %s49
      %p51 = scmp.eq.s32.totalorder %s25, 0
      %p52 = por %p50, %p51
      %s54 = sadd.s32 %s53, 1
      %p57 = scmp.eq.s32.totalorder %s19, 3
      %p58 = scmp.ne.s32.totalorder %s53, %s55
      %p59 = scmp.eq.s32.totalorder %s19, 0
      %p60 = por %p58, %p59
      %p61 = scmp.ne.s32.totalorder %s53, %s55
      %p62 = scmp.eq.s32.totalorder %s24, 3
      %p63 = por %p61, %p62
      %p64 = scmp.ne.s32.totalorder %s55, %s56
      %p65 = scmp.eq.s32.totalorder %s24, 0
      %p66 = por %p64, %p65
      %p67 = scmp.ne.s32.totalorder %s55, %s56
      %p68 = scmp.eq.s32.totalorder %s25, 3
      %p69 = por %p67, %p68
      %p71 = scmp.ne.s32.totalorder %s56, %s70
      %p72 = scmp.eq.s32.totalorder %s25, 0
      %p73 = por %p71, %p72
      %s75 = sadd.s32 %s74, 1
      %p78 = scmp.eq.s32.totalorder %s19, 3
      %p79 = scmp.ne.s32.totalorder %s74, %s76
      %p80 = scmp.eq.s32.totalorder %s19, 0
      %p81 = por %p79, %p80
      %p82 = scmp.ne.s32.totalorder %s74, %s76
      %p83 = scmp.eq.s32.totalorder %s24, 3
      %p84 = por %p82, %p83
      %p85 = scmp.ne.s32.totalorder %s76, %s77
      %p86 = scmp.eq.s32.totalorder %s24, 0
      %p87 = por %p85, %p86
      %p88 = scmp.ne.s32.totalorder %s76, %s77
      %p89 = scmp.eq.s32.totalorder %s25, 3
      %p90 = por %p88, %p89
      %p92 = scmp.ne.s32.totalorder %s77, %s91
      %p93 = scmp.eq.s32.totalorder %s25, 0
      %p94 = por %p92, %p93
      %s96 = sadd.s32 %s95, 1
      %p99 = scmp.eq.s32.totalorder %s19, 3
      %p100 = scmp.ne.s32.totalorder %s95, %s97
      %p101 = scmp.eq.s32.totalorder %s19, 0
      %p102 = por %p100, %p101
      %p103 = scmp.ne.s32.totalorder %s95, %s97
      %p104 = scmp.eq.s32.totalorder %s24, 3
      %p105 = por %p103, %p104
      %p106 = scmp.ne.s32.totalorder %s97, %s98
      %p107 = scmp.eq.s32.totalorder %s24, 0
      %p108 = por %p106, %p107
      %p109 = scmp.ne.s32.totalorder %s97, %s98
      %p110 = scmp.eq.s32.totalorder %s25, 3
      %p111 = por %p109, %p110
      %p113 = scmp.ne.s32.totalorder %s98, %s112
      %p114 = scmp.eq.s32.totalorder %s25, 0
      %p115 = por %p113, %p114
      %s117 = sadd.s32 %s116, 1
      %p120 = scmp.eq.s32.totalorder %s19, 3
      %p121 = scmp.ne.s32.totalorder %s116, %s118
      %p122 = scmp.eq.s32.totalorder %s19, 0
      %p123 = por %p121, %p122
      %p124 = scmp.ne.s32.totalorder %s116, %s118
      %p125 = scmp.eq.s32.totalorder %s24, 3
      %p126 = por %p124, %p125
      %p127 = scmp.ne.s32.totalorder %s118, %s119
      %p128 = scmp.eq.s32.totalorder %s24, 0
      %p129 = por %p127, %p128
      %p130 = scmp.ne.s32.totalorder %s118, %s119
      %p131 = scmp.eq.s32.totalorder %s25, 3
      %p132 = por %p130, %p131
      %p134 = scmp.ne.s32.totalorder %s119, %s133
      %p135 = scmp.eq.s32.totalorder %s25, 0
      %p136 = por %p134, %p135
      %s137 = ssub.s32 %s19, %s26
      %p138 = scmp.eq.s32.totalorder %s137, 0
      %s140 = sadd.s32 %s139, 1
      %s141 = scalar_select %p138, %s139, %s140
      %p144 = pneg %p138
      %p145 = scmp.eq.s32.totalorder %s19, 3
      %p146 = por %p144, %p145
      %p147 = scmp.ne.s32.totalorder %s139, %s142
      %p148 = scmp.eq.s32.totalorder %s19, 0
      %p149 = por %p147, %p148
      %p150 = scmp.ne.s32.totalorder %s139, %s142
      %p151 = scmp.eq.s32.totalorder %s24, 3
      %p152 = por %p150, %p151
      %p153 = scmp.ne.s32.totalorder %s142, %s143
      %p154 = scmp.eq.s32.totalorder %s24, 0
      %p155 = por %p153, %p154
      %p156 = scmp.ne.s32.totalorder %s142, %s143
      %p157 = scmp.eq.s32.totalorder %s25, 3
      %p158 = por %p156, %p157
      %p160 = scmp.ne.s32.totalorder %s143, %s159
      %p161 = scmp.eq.s32.totalorder %s25, 0
      %p162 = por %p160, %p161
      %p163 = scmp.le.s32.totalorder 1, %s19
      %p164 = scmp.lt.s32.totalorder %s19, 5
      %p165 = pnand %p163, %p164
      %p166 = pneg %p165
      // Predicated region
      $region9: #{tpu_custom_call.1} parent=5 // pred_check
        _
      $region10: #{tpu_custom_call.1} parent=5 // pred_check_branch
        %168 = sbr.rel (%p165) target = $region12
      $region11: #{tpu_custom_call.1} parent=5 // pred_region
        %s169 = ssub.s32 %s19, 1
        // Predicated region
        $region13: #{tpu_custom_call.1} parent=11 // pred_check
          %p170 = pneg %p66
        $region14: #{tpu_custom_call.1} parent=11 // pred_check_branch
          %172 = sbr.rel (%p170) target = $region16
        $region15: #{tpu_custom_call.1} parent=11 // pred_region
          %s174 = ssub.s32 4032, 4032
          %175 = vsyncadd [#allocation6], %s174
          %s176 = sshll.u32 [#allocation5], 4
          %s177 = int_to_ptr.vmem [resolvable:$true] %s176
          %182 = dma.hbm_to_vmem [thread:$0]  %s1, 4032, %s177, [#allocation6], 192, 192, 12
        $region16: #{tpu_custom_call.1} parent=11 // pred_fallthru
          _
        // Predicated region
        $region17: #{tpu_custom_call.1} parent=11 // pred_check
          %p183 = pneg %p87
        $region18: #{tpu_custom_call.1} parent=11 // pred_check_branch
          %185 = sbr.rel (%p183) target = $region20
        $region19: #{tpu_custom_call.1} parent=11 // pred_region
          %s187 = ssub.s32 27648, 27648
          %188 = vsyncadd [#allocation6], %s187
          %s189 = sshll.u32 [#allocation7], 4
          %s190 = int_to_ptr.vmem [resolvable:$true] %s189
          %195 = dma.hbm_to_vmem [thread:$0]  %s2, 27648, %s190, [#allocation6], 192, 192, 12
        $region20: #{tpu_custom_call.1} parent=11 // pred_fallthru
          _
        // Predicated region
        $region21: #{tpu_custom_call.1} parent=11 // pred_check
          %p196 = pneg %p108
        $region22: #{tpu_custom_call.1} parent=11 // pred_check_branch
          %198 = sbr.rel (%p196) target = $region24
        $region23: #{tpu_custom_call.1} parent=11 // pred_region
          %s200 = ssub.s32 3328, 3328
          %201 = vsyncadd [#allocation9], %s200
          %s202 = sshll.u32 [#allocation8], 4
          %s203 = int_to_ptr.vmem [resolvable:$true] %s202
          %208 = dma.hbm_to_vmem [thread:$0]  %s3, 3328, %s203, [#allocation9], 64, 64, 4
        $region24: #{tpu_custom_call.1} parent=11 // pred_fallthru
          _
        // Predicated region
        $region25: #{tpu_custom_call.1} parent=11 // pred_check
          %p209 = pneg %p129
        $region26: #{tpu_custom_call.1} parent=11 // pred_check_branch
          %211 = sbr.rel (%p209) target = $region28
        $region27: #{tpu_custom_call.1} parent=11 // pred_region
          %s213 = ssub.s32 384, 384
          %214 = vsyncadd [#allocation9], %s213
          %s216 = sshll.u32 [#allocation10], 4
          %s217 = int_to_ptr.vmem [resolvable:$true] %s216
          %219 = dma.hbm_to_vmem [thread:$0]  %s4, 384, %s217, [#allocation9]
        $region28: #{tpu_custom_call.1} parent=11 // pred_fallthru
          _
      $region12: #{tpu_custom_call.1} parent=5 // pred_fallthru
        _
      %p220 = scmp.lt.s32.totalorder %s19, 4
      // Predicated region
      $region29: #{tpu_custom_call.1} parent=5 // pred_check
        %p221 = pneg %p220
      $region30: #{tpu_custom_call.1} parent=5 // pred_check_branch
        %223 = sbr.rel (%p221) target = $region32
      $region31: #{tpu_custom_call.1} parent=5 // pred_region
        // Predicated region
        $region33: #{tpu_custom_call.1} parent=31 // pred_check
          %p224 = pneg %p39
        $region34: #{tpu_custom_call.1} parent=31 // pred_check_branch
          %226 = sbr.rel (%p224) target = $region36
        $region35: #{tpu_custom_call.1} parent=31 // pred_region
          %s227 = sand.u32 %s29, 1
          %s228 = scalar_lea.sflag [#allocation3], %s227
          %s229 = sand.u32 %s29, 1
          %s230 = smul.addr %s229, 16
          %s231 = scalar_lea.vmem [#allocation2], %s230
          %s233 = ssub.s32 256, 256
          %234 = vsyncadd %s228, %s233
          %s235 = smul.addr %s19, 2
          %s236 = smul.addr %s235, 128
          %s237 = scalar_lea.hbm %s0, %s236
          %s239 = sshll.u32 %s231, 4
          %s240 = int_to_ptr.vmem [resolvable:$true] %s239
          %242 = dma.hbm_to_vmem [thread:$0]  %s237, 256, %s240, %s228
        $region36: #{tpu_custom_call.1} parent=31 // pred_fallthru
          _
      $region32: #{tpu_custom_call.1} parent=5 // pred_fallthru
        _
      %p243 = scmp.le.s32.totalorder 1, %s19
      %p244 = scmp.lt.s32.totalorder %s19, 5
      %p245 = pnand %p243, %p244
      %p246 = pneg %p245
      // Predicated region
      $region37: #{tpu_custom_call.1} parent=5 // pred_check
        _
      $region38: #{tpu_custom_call.1} parent=5 // pred_check_branch
        %248 = sbr.rel (%p245) target = $region40
      $region39: #{tpu_custom_call.1} parent=5 // pred_region
        %s249 = ssub.s32 %s19, 1
        %s250 = sand.u32 %s32, 1
        %s251 = scalar_lea.sflag [#allocation3], %s250
        %s252 = sand.u32 %s32, 1
        %s253 = smul.addr %s252, 16
        %s254 = scalar_lea.vmem [#allocation2], %s253
        // Predicated region
        $region41: #{tpu_custom_call.1} parent=39 // pred_check
          %p255 = pneg %p45
        $region42: #{tpu_custom_call.1} parent=39 // pred_check_branch
          %257 = sbr.rel (%p255) target = $region44
        $region43: #{tpu_custom_call.1} parent=39 // pred_region
          %258 = dma.done %s251, 256
        $region44: #{tpu_custom_call.1} parent=39 // pred_fallthru
          _
        // Predicated region
        $region45: #{tpu_custom_call.1} parent=39 // pred_check
          %p259 = pneg %p66
        $region46: #{tpu_custom_call.1} parent=39 // pred_check_branch
          %261 = sbr.rel (%p259) target = $region48
        $region47: #{tpu_custom_call.1} parent=39 // pred_region
          %262 = dma.done [#allocation6], 4032
        $region48: #{tpu_custom_call.1} parent=39 // pred_fallthru
          _
        // Predicated region
        $region49: #{tpu_custom_call.1} parent=39 // pred_check
          %p263 = pneg %p87
        $region50: #{tpu_custom_call.1} parent=39 // pred_check_branch
          %265 = sbr.rel (%p263) target = $region52
        $region51: #{tpu_custom_call.1} parent=39 // pred_region
          %266 = dma.done [#allocation6], 27648
        $region52: #{tpu_custom_call.1} parent=39 // pred_fallthru
          _
        // Predicated region
        $region53: #{tpu_custom_call.1} parent=39 // pred_check
          %p267 = pneg %p108
        $region54: #{tpu_custom_call.1} parent=39 // pred_check_branch
          %269 = sbr.rel (%p267) target = $region56
        $region55: #{tpu_custom_call.1} parent=39 // pred_region
          %270 = dma.done [#allocation9], 3328
        $region56: #{tpu_custom_call.1} parent=39 // pred_fallthru
          _
        // Predicated region
        $region57: #{tpu_custom_call.1} parent=39 // pred_check
          %p271 = pneg %p129
        $region58: #{tpu_custom_call.1} parent=39 // pred_check_branch
          %273 = sbr.rel (%p271) target = $region60
        $region59: #{tpu_custom_call.1} parent=39 // pred_region
          %274 = dma.done [#allocation9], 384
        $region60: #{tpu_custom_call.1} parent=39 // pred_fallthru
          _
        %s275 = sand.u32 %s32, 1
        %s276 = scalar_lea.sflag [#allocation3], %s275
        %s277 = sand.u32 %s32, 1
        %s278 = smul.addr %s277, 16
        %s279 = scalar_lea.vmem [#allocation2], %s278
        %p280 = pneg %p45
        %p281 = pneg %p42
        %p282 = pneg %p66
        %p283 = pneg %p63
        %p284 = pneg %p87
        %p285 = pneg %p84
        %p286 = pneg %p108
        %p287 = pneg %p105
        %p288 = pneg %p129
        %p289 = pneg %p126
        %p290 = pneg %p155
        %p291 = pneg %p152
        %s292 = sand.u32 %s142, 1
        %s293 = scalar_lea.sflag [#allocation4], %s292
        %s294 = sand.u32 %s142, 1
        %s295 = smul.addr %s294, 8
        %s296 = scalar_lea.vmem [#allocation11], %s295
        %v298 = vld [vmem:[%s254] sm:$0xff]
        %v299 = vld [vmem:[%s254 + $0x8] sm:$0xff]
        %v300 = vld [vmem:[#allocation5] sm:$0xff]
        %v301 = vld [vmem:[#allocation5 + $0x8] sm:$0xf]
        %v302 = vld [vmem:[#allocation5 + $0xc] sm:$0xff]
        %v303 = vld [vmem:[#allocation5 + $0x14] sm:$0xf]
        %v304 = vld [vmem:[#allocation5 + $0x18] sm:$0xff]
        %v305 = vld [vmem:[#allocation5 + $0x20] sm:$0xf]
        %v306 = vld [vmem:[#allocation5 + $0x24] sm:$0xff]
        %v307 = vld [vmem:[#allocation5 + $0x2c] sm:$0xf]
        %v308 = vld [vmem:[#allocation5 + $0x30] sm:$0xff]
        %v309 = vld [vmem:[#allocation5 + $0x38] sm:$0xf]
        %v310 = vld [vmem:[#allocation5 + $0x3c] sm:$0xff]
        %v311 = vld [vmem:[#allocation5 + $0x44] sm:$0xf]
        %v312 = vld [vmem:[#allocation5 + $0x48] sm:$0xff]
        %v313 = vld [vmem:[#allocation5 + $0x50] sm:$0xf]
        %v314 = vld [vmem:[#allocation5 + $0x54] sm:$0xff]
        %v315 = vld [vmem:[#allocation5 + $0x5c] sm:$0xf]
        %v316 = vld [vmem:[#allocation5 + $0x60] sm:$0xff]
        %v317 = vld [vmem:[#allocation5 + $0x68] sm:$0xf]
        %v318 = vld [vmem:[#allocation5 + $0x6c] sm:$0xff]
        %v319 = vld [vmem:[#allocation5 + $0x74] sm:$0xf]
        %v320 = vld [vmem:[#allocation5 + $0x78] sm:$0xff]
        %v321 = vld [vmem:[#allocation5 + $0x80] sm:$0xf]
        %v322 = vld [vmem:[#allocation5 + $0x84] sm:$0xff]
        %v323 = vld [vmem:[#allocation5 + $0x8c] sm:$0xf]
        %v324 = vld [vmem:[#allocation5 + $0x90] sm:$0xff]
        %v325 = vld [vmem:[#allocation5 + $0x98] sm:$0xf]
        %v326 = vld [vmem:[#allocation5 + $0x9c] sm:$0xff]
        %v327 = vld [vmem:[#allocation5 + $0xa4] sm:$0xf]
        %v328 = vld [vmem:[#allocation5 + $0xa8] sm:$0xff]
        %v329 = vld [vmem:[#allocation5 + $0xb0] sm:$0xf]
        %v330 = vld [vmem:[#allocation5 + $0xb4] sm:$0xff]
        %v331 = vld [vmem:[#allocation5 + $0xbc] sm:$0xf]
        %v332 = vld [vmem:[#allocation5 + $0xc0] sm:$0xff]
        %v333 = vld [vmem:[#allocation5 + $0xc8] sm:$0xf]
        %v334 = vld [vmem:[#allocation5 + $0xcc] sm:$0xff]
        %v335 = vld [vmem:[#allocation5 + $0xd4] sm:$0xf]
        %v336 = vld [vmem:[#allocation5 + $0xd8] sm:$0xff]
        %v337 = vld [vmem:[#allocation5 + $0xe0] sm:$0xf]
        %v338 = vld [vmem:[#allocation5 + $0xe4] sm:$0xff]
        %v339 = vld [vmem:[#allocation5 + $0xec] sm:$0xf]
        %v340 = vld [vmem:[#allocation5 + $0xf0] sm:$0x11]
        %v341 = vld [vmem:[#allocation5 + $0xf8] sm:$0x1]
        %v342 = vld [vmem:[#allocation10] ss:$8 sm:$0x7]
        %v343 = vpack.c.bf16 %v298, %v298
        %v344 = vpack.c.bf16 %v299, %v299
        %v346 = vlaneseq
        %v347 = vshrl.u32 %v346, 7
        %v348 = vsub.s32 0, %v347
        %v349 = vrot.slane %v342, %v348
        %v350 = vlaneseq
        %v351 = vshrl.u32 %v350, 7
        %v352 = vsub.s32 1, %v351
        %v353 = vrot.slane %v342, %v352
        %v354 = vlaneseq
        %v355 = vshrl.u32 %v354, 7
        %v356 = vsub.s32 2, %v355
        %v357 = vrot.slane %v342, %v356
        %v403 = vunpack.c.l.b16 %v300
        %v404 = vunpack.c.h.b16 %v300
        %v405 = vunpack.c.l.b16 %v301
        %v406 = vunpack.c.l.b16 %v302
        %v407 = vunpack.c.h.b16 %v302
        %v408 = vunpack.c.l.b16 %v303
        %v409 = vunpack.c.l.b16 %v304
        %v410 = vunpack.c.h.b16 %v304
        %v411 = vunpack.c.l.b16 %v305
        %v412 = vunpack.c.l.b16 %v306
        %v413 = vunpack.c.h.b16 %v306
        %v414 = vunpack.c.l.b16 %v307
        %v415 = vunpack.c.l.b16 %v308
        %v416 = vunpack.c.h.b16 %v308
        %v417 = vunpack.c.l.b16 %v309
        %v418 = vunpack.c.l.b16 %v310
        %v419 = vunpack.c.h.b16 %v310
        %v420 = vunpack.c.l.b16 %v311
        %v421 = vunpack.c.l.b16 %v312
        %v422 = vunpack.c.h.b16 %v312
        %v423 = vunpack.c.l.b16 %v313
        %v424 = vunpack.c.l.b16 %v314
        %v425 = vunpack.c.h.b16 %v314
        %v426 = vunpack.c.l.b16 %v315
        %v427 = vunpack.c.l.b16 %v316
        %v428 = vunpack.c.h.b16 %v316
        %v429 = vunpack.c.l.b16 %v317
        %v430 = vunpack.c.l.b16 %v318
        %v431 = vunpack.c.h.b16 %v318
        %v432 = vunpack.c.l.b16 %v319
        %v433 = vunpack.c.l.b16 %v320
        %v434 = vunpack.c.h.b16 %v320
        %v435 = vunpack.c.l.b16 %v321
        %v436 = vunpack.c.l.b16 %v322
        %v437 = vunpack.c.h.b16 %v322
        %v438 = vunpack.c.l.b16 %v323
        %v439 = vunpack.c.l.b16 %v324
        %v440 = vunpack.c.h.b16 %v324
        %v441 = vunpack.c.l.b16 %v325
        %v442 = vunpack.c.l.b16 %v326
        %v443 = vunpack.c.h.b16 %v326
        %v444 = vunpack.c.l.b16 %v327
        %v445 = vunpack.c.l.b16 %v328
        %v446 = vunpack.c.h.b16 %v328
        %v447 = vunpack.c.l.b16 %v329
        %v448 = vunpack.c.l.b16 %v330
        %v449 = vunpack.c.h.b16 %v330
        %v450 = vunpack.c.l.b16 %v331
        %v451 = vunpack.c.l.b16 %v332
        %v452 = vunpack.c.h.b16 %v332
        %v453 = vunpack.c.l.b16 %v333
        %v454 = vunpack.c.l.b16 %v334
        %v455 = vunpack.c.h.b16 %v334
        %v456 = vunpack.c.l.b16 %v335
        %v457 = vunpack.c.l.b16 %v336
        %v458 = vunpack.c.h.b16 %v336
        %v459 = vunpack.c.l.b16 %v337
        %v460 = vunpack.c.l.b16 %v338
        %v461 = vunpack.c.h.b16 %v338
        %v462 = vunpack.c.l.b16 %v339
        %v463 = vunpack.c.l.b16 %v340
        %v464 = vunpack.c.h.b16 %v340
        %v465 = vunpack.c.l.b16 %v341
        %v466 = vpack.c.b16 %v406, %v403
        %v467 = vpack.c.b16 %v407, %v404
        %v468 = vpack.c.b16 %v408, %v405
        %v469 = vpack.c.b16 %v412, %v409
        %v470 = vpack.c.b16 %v413, %v410
        %v471 = vpack.c.b16 %v414, %v411
        %v472 = vpack.c.b16 %v418, %v415
        %v473 = vpack.c.b16 %v419, %v416
        %v474 = vpack.c.b16 %v420, %v417
        %v475 = vpack.c.b16 %v424, %v421
        %v476 = vpack.c.b16 %v425, %v422
        %v477 = vpack.c.b16 %v426, %v423
        %v478 = vpack.c.b16 %v430, %v427
        %v479 = vpack.c.b16 %v431, %v428
        %v480 = vpack.c.b16 %v432, %v429
        %v481 = vpack.c.b16 %v436, %v433
        %v482 = vpack.c.b16 %v437, %v434
        %v483 = vpack.c.b16 %v438, %v435
        %v484 = vpack.c.b16 %v442, %v439
        %v485 = vpack.c.b16 %v443, %v440
        %v486 = vpack.c.b16 %v444, %v441
        %v487 = vpack.c.b16 %v448, %v445
        %v488 = vpack.c.b16 %v449, %v446
        %v489 = vpack.c.b16 %v450, %v447
        %v490 = vpack.c.b16 %v454, %v451
        %v491 = vpack.c.b16 %v455, %v452
        %v492 = vpack.c.b16 %v456, %v453
        %v493 = vpack.c.b16 %v460, %v457
        %v494 = vpack.c.b16 %v461, %v458
        %v495 = vpack.c.b16 %v462, %v459
        %v496 = vpack.c.b16 %v463, %v463
        %v497 = vpack.c.b16 %v464, %v464
        %v498 = vpack.c.b16 %v465, %v465
        %vm529 = vcmask 277504
        %v531 = vsel %vm529, %v344, 0
        %vm533 = vcmask 1040384
        %v535 = vsel %vm533, %v496, 0
        %v538 = vsel %vm533, %v497, 0
        %v541 = vsel %vm533, %v498, 0
        %543 = vmatprep.subr.bf16.mxu0 %v488
        %544 = vmatpush1.bf16.msra.mxu0 %v487
        %545 = vmatprep.subr.bf16.mxu0 %v485
        %546 = vmatpush1.bf16.msra.mxu0 %v484
        %547 = vmatprep.subr.bf16.mxu0 %v482
        %548 = vmatpush1.bf16.msra.mxu0 %v481
        %549 = vmatprep.subr.bf16.mxu0 %v479
        %550 = vmatpush1.bf16.msra.mxu0 %v478
        %551 = vmatprep.subr.bf16.mxu0 %v476
        %552 = vmatpush1.bf16.msra.mxu0 %v475
        %553 = vmatprep.subr.bf16.mxu0 %v473
        %554 = vmatpush1.bf16.msra.mxu0 %v472
        %555 = vmatprep.subr.bf16.mxu0 %v470
        %556 = vmatpush1.bf16.msra.mxu0 %v469
        %557 = vmatprep.subr.bf16.mxu0 %v467
        %558 = vmatpush1.bf16.msra.mxu0 %v466
        %559 = vmatprep.subr.bf16.mxu0 0
        %560 = vmatpush2.bf16.msra.mxu0 0
        %561 = vmatprep.subr.bf16.mxu0 0
        %562 = vmatpush2.bf16.msra.mxu0 0
        %563 = vmatprep.subr.bf16.mxu0 0
        %564 = vmatpush2.bf16.msra.mxu0 0
        %565 = vmatprep.subr.bf16.mxu0 0
        %566 = vmatpush2.bf16.msra.mxu0 0
        %567 = vmatprep.subr.bf16.mxu0 0
        %568 = vmatpush2.bf16.msra.mxu0 0
        %569 = vmatprep.subr.bf16.mxu0 %v538
        %570 = vmatpush2.bf16.msra.mxu0 %v535
        %571 = vmatprep.subr.bf16.mxu0 %v494
        %572 = vmatpush2.bf16.msra.mxu0 %v493
        %573 = vmatprep.subr.bf16.mxu0 %v491
        %574 = vmatpush2.bf16.msra.mxu0 %v490
        %575 = vmatprep.mubr.bf16.mxu0 %v531
        %576 = vmatmul.mubr.bf16.gmra.mxu0 %v343
        %v577 = vpop.f32.mrf.mxu0
        %v578 = vadd.f32 %v349, %v577
        %v579 = vpop.f32.mrf.mxu0
        %v580 = vadd.f32 %v353, %v579
        %v581 = vpop.f32.mrf.mxu0
        %v582 = vpop.f32.mrf.mxu0
        %583 = vdwg.mxu0
        %584 = vmatprep.subr.bf16.mxu0 0
        %585 = vmatpush1.bf16.msra.mxu0 %v489
        %586 = vmatprep.subr.bf16.mxu0 0
        %587 = vmatpush1.bf16.msra.mxu0 %v486
        %588 = vmatprep.subr.bf16.mxu0 0
        %589 = vmatpush1.bf16.msra.mxu0 %v483
        %590 = vmatprep.subr.bf16.mxu0 0
        %591 = vmatpush1.bf16.msra.mxu0 %v480
        %592 = vmatprep.subr.bf16.mxu0 0
        %593 = vmatpush1.bf16.msra.mxu0 %v477
        %594 = vmatprep.subr.bf16.mxu0 0
        %595 = vmatpush1.bf16.msra.mxu0 %v474
        %596 = vmatprep.subr.bf16.mxu0 0
        %597 = vmatpush1.bf16.msra.mxu0 %v471
        %598 = vmatprep.subr.bf16.mxu0 0
        %599 = vmatpush1.bf16.msra.mxu0 %v468
        %600 = vmatprep.subr.bf16.mxu0 0
        %601 = vmatpush2.bf16.msra.mxu0 0
        %602 = vmatprep.subr.bf16.mxu0 0
        %603 = vmatpush2.bf16.msra.mxu0 0
        %604 = vmatprep.subr.bf16.mxu0 0
        %605 = vmatpush2.bf16.msra.mxu0 0
        %606 = vmatprep.subr.bf16.mxu0 0
        %607 = vmatpush2.bf16.msra.mxu0 0
        %608 = vmatprep.subr.bf16.mxu0 0
        %609 = vmatpush2.bf16.msra.mxu0 0
        %610 = vmatprep.subr.bf16.mxu0 0
        %611 = vmatpush2.bf16.msra.mxu0 %v541
        %612 = vmatprep.subr.bf16.mxu0 0
        %613 = vmatpush2.bf16.msra.mxu0 %v495
        %614 = vmatprep.subr.bf16.mxu0 0
        %615 = vmatpush2.bf16.msra.mxu0 %v492
        %616 = vmatprep.mubr.bf16.mxu0 %v531
        %617 = vmatmul.mubr.bf16.gmra.mxu0 %v343
        %v618 = vpop.f32.mrf.mxu0
        %v619 = vadd.f32 %v357, %v618
        %v620 = vpop.f32.mrf.mxu0
        %v621 = vpop.f32.mrf.mxu0
        %v622 = vpop.f32.mrf.mxu0
        %623 = vdwg.mxu0
        %v624 = vmax.f32 %v578, 0.0
        %v625 = vmax.f32 %v580, 0.0
        %v626 = vmax.f32 %v619, 0.0
        %v627 = vld [vmem:[#allocation7] sm:$0xff]
        %v628 = vld [vmem:[#allocation7 + $0x8] sm:$0xf]
        %v629 = vld [vmem:[#allocation7 + $0xc] sm:$0xff]
        %v630 = vld [vmem:[#allocation7 + $0x14] sm:$0xf]
        %v631 = vld [vmem:[#allocation7 + $0x18] sm:$0xff]
        %v632 = vld [vmem:[#allocation7 + $0x20] sm:$0xf]
        %v633 = vld [vmem:[#allocation7 + $0x24] sm:$0xff]
        %v634 = vld [vmem:[#allocation7 + $0x2c] sm:$0xf]
        %v635 = vld [vmem:[#allocation7 + $0x30] sm:$0xff]
        %v636 = vld [vmem:[#allocation7 + $0x38] sm:$0xf]
        %v637 = vld [vmem:[#allocation7 + $0x3c] sm:$0xff]
        %v638 = vld [vmem:[#allocation7 + $0x44] sm:$0xf]
        %v639 = vld [vmem:[#allocation7 + $0x48] sm:$0xff]
        %v640 = vld [vmem:[#allocation7 + $0x50] sm:$0xf]
        %v641 = vld [vmem:[#allocation7 + $0x54] sm:$0xff]
        %v642 = vld [vmem:[#allocation7 + $0x5c] sm:$0xf]
        %v643 = vld [vmem:[#allocation7 + $0x60] sm:$0xff]
        %v644 = vld [vmem:[#allocation7 + $0x68] sm:$0xf]
        %v645 = vld [vmem:[#allocation7 + $0x6c] sm:$0xff]
        %v646 = vld [vmem:[#allocation7 + $0x74] sm:$0xf]
        %v647 = vld [vmem:[#allocation7 + $0x78] sm:$0xff]
        %v648 = vld [vmem:[#allocation7 + $0x80] sm:$0xf]
        %v649 = vld [vmem:[#allocation7 + $0x84] sm:$0xff]
        %v650 = vld [vmem:[#allocation7 + $0x8c] sm:$0xf]
        %v651 = vld [vmem:[#allocation7 + $0x90] sm:$0xff]
        %v652 = vld [vmem:[#allocation7 + $0x98] sm:$0xf]
        %v653 = vld [vmem:[#allocation7 + $0x9c] sm:$0xff]
        %v654 = vld [vmem:[#allocation7 + $0xa4] sm:$0xf]
        %v655 = vld [vmem:[#allocation7 + $0xa8] sm:$0xff]
        %v656 = vld [vmem:[#allocation7 + $0xb0] sm:$0xf]
        %v657 = vld [vmem:[#allocation7 + $0xb4] sm:$0xff]
        %v658 = vld [vmem:[#allocation7 + $0xbc] sm:$0xf]
        %v659 = vld [vmem:[#allocation7 + $0xc0] sm:$0xff]
        %v660 = vld [vmem:[#allocation7 + $0xc8] sm:$0xf]
        %v661 = vld [vmem:[#allocation7 + $0xcc] sm:$0xff]
        %v662 = vld [vmem:[#allocation7 + $0xd4] sm:$0xf]
        %v663 = vld [vmem:[#allocation7 + $0xd8] sm:$0xff]
        %v664 = vld [vmem:[#allocation7 + $0xe0] sm:$0xf]
        %v665 = vld [vmem:[#allocation7 + $0xe4] sm:$0xff]
        %v666 = vld [vmem:[#allocation7 + $0xec] sm:$0xf]
        %v667 = vld [vmem:[#allocation7 + $0xf0] sm:$0xff]
        %v668 = vld [vmem:[#allocation7 + $0xf8] sm:$0xf]
        %v669 = vld [vmem:[#allocation7 + $0xfc] sm:$0xff]
        %v670 = vld [vmem:[#allocation7 + $0x104] sm:$0xf]
        %v671 = vld [vmem:[#allocation7 + $0x108] sm:$0xff]
        %v672 = vld [vmem:[#allocation7 + $0x110] sm:$0xf]
        %v673 = vld [vmem:[#allocation7 + $0x114] sm:$0xff]
        %v674 = vld [vmem:[#allocation7 + $0x11c] sm:$0xf]
        %v675 = vld [vmem:[#allocation7 + $0x120] sm:$0xff]
        %v676 = vld [vmem:[#allocation7 + $0x128] sm:$0xf]
        %v677 = vld [vmem:[#allocation7 + $0x12c] sm:$0xff]
        %v678 = vld [vmem:[#allocation7 + $0x134] sm:$0xf]
        %v679 = vld [vmem:[#allocation7 + $0x138] sm:$0xff]
        %v680 = vld [vmem:[#allocation7 + $0x140] sm:$0xf]
        %v681 = vld [vmem:[#allocation7 + $0x144] sm:$0xff]
        %v682 = vld [vmem:[#allocation7 + $0x14c] sm:$0xf]
        %v683 = vld [vmem:[#allocation7 + $0x150] sm:$0xff]
        %v684 = vld [vmem:[#allocation7 + $0x158] sm:$0xf]
        %v685 = vld [vmem:[#allocation7 + $0x15c] sm:$0xff]
        %v686 = vld [vmem:[#allocation7 + $0x164] sm:$0xf]
        %v687 = vld [vmem:[#allocation7 + $0x168] sm:$0xff]
        %v688 = vld [vmem:[#allocation7 + $0x170] sm:$0xf]
        %v689 = vld [vmem:[#allocation7 + $0x174] sm:$0xff]
        %v690 = vld [vmem:[#allocation7 + $0x17c] sm:$0xf]
        %v691 = vld [vmem:[#allocation7 + $0x180] sm:$0xff]
        %v692 = vld [vmem:[#allocation7 + $0x188] sm:$0xf]
        %v693 = vld [vmem:[#allocation7 + $0x18c] sm:$0xff]
        %v694 = vld [vmem:[#allocation7 + $0x194] sm:$0xf]
        %v695 = vld [vmem:[#allocation7 + $0x198] sm:$0xff]
        %v696 = vld [vmem:[#allocation7 + $0x1a0] sm:$0xf]
        %v697 = vld [vmem:[#allocation7 + $0x1a4] sm:$0xff]
        %v698 = vld [vmem:[#allocation7 + $0x1ac] sm:$0xf]
        %s699 = scalar_lea.vmem [#allocation10], 1
        %v700 = vld [vmem:[%s699] ss:$8 sm:$0x7]
        %v701 = vpack.c.bf16 %v624, %v624
        %v702 = vpack.c.bf16 %v625, %v625
        %v703 = vpack.c.bf16 %v626, %v626
        %v705 = vlaneseq
        %v706 = vshrl.u32 %v705, 7
        %v707 = vsub.s32 0, %v706
        %v708 = vrot.slane %v700, %v707
        %v709 = vlaneseq
        %v710 = vshrl.u32 %v709, 7
        %v711 = vsub.s32 1, %v710
        %v712 = vrot.slane %v700, %v711
        %v713 = vlaneseq
        %v714 = vshrl.u32 %v713, 7
        %v715 = vsub.s32 2, %v714
        %v716 = vrot.slane %v700, %v715
        %v792 = vunpack.c.l.b16 %v627
        %v793 = vunpack.c.h.b16 %v627
        %v794 = vunpack.c.l.b16 %v628
        %v795 = vunpack.c.l.b16 %v629
        %v796 = vunpack.c.h.b16 %v629
        %v797 = vunpack.c.l.b16 %v630
        %v798 = vunpack.c.l.b16 %v631
        %v799 = vunpack.c.h.b16 %v631
        %v800 = vunpack.c.l.b16 %v632
        %v801 = vunpack.c.l.b16 %v633
        %v802 = vunpack.c.h.b16 %v633
        %v803 = vunpack.c.l.b16 %v634
        %v804 = vunpack.c.l.b16 %v635
        %v805 = vunpack.c.h.b16 %v635
        %v806 = vunpack.c.l.b16 %v636
        %v807 = vunpack.c.l.b16 %v637
        %v808 = vunpack.c.h.b16 %v637
        %v809 = vunpack.c.l.b16 %v638
        %v810 = vunpack.c.l.b16 %v639
        %v811 = vunpack.c.h.b16 %v639
        %v812 = vunpack.c.l.b16 %v640
        %v813 = vunpack.c.l.b16 %v641
        %v814 = vunpack.c.h.b16 %v641
        %v815 = vunpack.c.l.b16 %v642
        %v816 = vunpack.c.l.b16 %v643
        %v817 = vunpack.c.h.b16 %v643
        %v818 = vunpack.c.l.b16 %v644
        %v819 = vunpack.c.l.b16 %v645
        %v820 = vunpack.c.h.b16 %v645
        %v821 = vunpack.c.l.b16 %v646
        %v822 = vunpack.c.l.b16 %v647
        %v823 = vunpack.c.h.b16 %v647
        %v824 = vunpack.c.l.b16 %v648
        %v825 = vunpack.c.l.b16 %v649
        %v826 = vunpack.c.h.b16 %v649
        %v827 = vunpack.c.l.b16 %v650
        %v828 = vunpack.c.l.b16 %v651
        %v829 = vunpack.c.h.b16 %v651
        %v830 = vunpack.c.l.b16 %v652
        %v831 = vunpack.c.l.b16 %v653
        %v832 = vunpack.c.h.b16 %v653
        %v833 = vunpack.c.l.b16 %v654
        %v834 = vunpack.c.l.b16 %v655
        %v835 = vunpack.c.h.b16 %v655
        %v836 = vunpack.c.l.b16 %v656
        %v837 = vunpack.c.l.b16 %v657
        %v838 = vunpack.c.h.b16 %v657
        %v839 = vunpack.c.l.b16 %v658
        %v840 = vunpack.c.l.b16 %v659
        %v841 = vunpack.c.h.b16 %v659
        %v842 = vunpack.c.l.b16 %v660
        %v843 = vunpack.c.l.b16 %v661
        %v844 = vunpack.c.h.b16 %v661
        %v845 = vunpack.c.l.b16 %v662
        %v846 = vunpack.c.l.b16 %v663
        %v847 = vunpack.c.h.b16 %v663
        %v848 = vunpack.c.l.b16 %v664
        %v849 = vunpack.c.l.b16 %v665
        %v850 = vunpack.c.h.b16 %v665
        %v851 = vunpack.c.l.b16 %v666
        %v852 = vunpack.c.l.b16 %v667
        %v853 = vunpack.c.h.b16 %v667
        %v854 = vunpack.c.l.b16 %v668
        %v855 = vunpack.c.l.b16 %v669
        %v856 = vunpack.c.h.b16 %v669
        %v857 = vunpack.c.l.b16 %v670
        %v858 = vunpack.c.l.b16 %v671
        %v859 = vunpack.c.h.b16 %v671
        %v860 = vunpack.c.l.b16 %v672
        %v861 = vunpack.c.l.b16 %v673
        %v862 = vunpack.c.h.b16 %v673
        %v863 = vunpack.c.l.b16 %v674
        %v864 = vunpack.c.l.b16 %v675
        %v865 = vunpack.c.h.b16 %v675
        %v866 = vunpack.c.l.b16 %v676
        %v867 = vunpack.c.l.b16 %v677
        %v868 = vunpack.c.h.b16 %v677
        %v869 = vunpack.c.l.b16 %v678
        %v870 = vunpack.c.l.b16 %v679
        %v871 = vunpack.c.h.b16 %v679
        %v872 = vunpack.c.l.b16 %v680
        %v873 = vunpack.c.l.b16 %v681
        %v874 = vunpack.c.h.b16 %v681
        %v875 = vunpack.c.l.b16 %v682
        %v876 = vunpack.c.l.b16 %v683
        %v877 = vunpack.c.h.b16 %v683
        %v878 = vunpack.c.l.b16 %v684
        %v879 = vunpack.c.l.b16 %v685
        %v880 = vunpack.c.h.b16 %v685
        %v881 = vunpack.c.l.b16 %v686
        %v882 = vunpack.c.l.b16 %v687
        %v883 = vunpack.c.h.b16 %v687
        %v884 = vunpack.c.l.b16 %v688
        %v885 = vunpack.c.l.b16 %v689
        %v886 = vunpack.c.h.b16 %v689
        %v887 = vunpack.c.l.b16 %v690
        %v888 = vunpack.c.l.b16 %v691
        %v889 = vunpack.c.h.b16 %v691
        %v890 = vunpack.c.l.b16 %v692
        %v891 = vunpack.c.l.b16 %v693
        %v892 = vunpack.c.h.b16 %v693
        %v893 = vunpack.c.l.b16 %v694
        %v894 = vunpack.c.l.b16 %v695
        %v895 = vunpack.c.h.b16 %v695
        %v896 = vunpack.c.l.b16 %v696
        %v897 = vunpack.c.l.b16 %v697
        %v898 = vunpack.c.h.b16 %v697
        %v899 = vunpack.c.l.b16 %v698
        %v900 = vpack.c.b16 %v795, %v792
        %v901 = vpack.c.b16 %v796, %v793
        %v902 = vpack.c.b16 %v797, %v794
        %v903 = vpack.c.b16 %v801, %v798
        %v904 = vpack.c.b16 %v802, %v799
        %v905 = vpack.c.b16 %v803, %v800
        %v906 = vpack.c.b16 %v807, %v804
        %v907 = vpack.c.b16 %v808, %v805
        %v908 = vpack.c.b16 %v809, %v806
        %v909 = vpack.c.b16 %v813, %v810
        %v910 = vpack.c.b16 %v814, %v811
        %v911 = vpack.c.b16 %v815, %v812
        %v912 = vpack.c.b16 %v819, %v816
        %v913 = vpack.c.b16 %v820, %v817
        %v914 = vpack.c.b16 %v821, %v818
        %v915 = vpack.c.b16 %v825, %v822
        %v916 = vpack.c.b16 %v826, %v823
        %v917 = vpack.c.b16 %v827, %v824
        %v918 = vpack.c.b16 %v831, %v828
        %v919 = vpack.c.b16 %v832, %v829
        %v920 = vpack.c.b16 %v833, %v830
        %v921 = vpack.c.b16 %v837, %v834
        %v922 = vpack.c.b16 %v838, %v835
        %v923 = vpack.c.b16 %v839, %v836
        %v924 = vpack.c.b16 %v843, %v840
        %v925 = vpack.c.b16 %v844, %v841
        %v926 = vpack.c.b16 %v845, %v842
        %v927 = vpack.c.b16 %v849, %v846
        %v928 = vpack.c.b16 %v850, %v847
        %v929 = vpack.c.b16 %v851, %v848
        %v930 = vpack.c.b16 %v855, %v852
        %v931 = vpack.c.b16 %v856, %v853
        %v932 = vpack.c.b16 %v857, %v854
        %v933 = vpack.c.b16 %v861, %v858
        %v934 = vpack.c.b16 %v862, %v859
        %v935 = vpack.c.b16 %v863, %v860
        %v936 = vpack.c.b16 %v867, %v864
        %v937 = vpack.c.b16 %v868, %v865
        %v938 = vpack.c.b16 %v869, %v866
        %v939 = vpack.c.b16 %v873, %v870
        %v940 = vpack.c.b16 %v874, %v871
        %v941 = vpack.c.b16 %v875, %v872
        %v942 = vpack.c.b16 %v879, %v876
        %v943 = vpack.c.b16 %v880, %v877
        %v944 = vpack.c.b16 %v881, %v878
        %v945 = vpack.c.b16 %v885, %v882
        %v946 = vpack.c.b16 %v886, %v883
        %v947 = vpack.c.b16 %v887, %v884
        %v948 = vpack.c.b16 %v891, %v888
        %v949 = vpack.c.b16 %v892, %v889
        %v950 = vpack.c.b16 %v893, %v890
        %v951 = vpack.c.b16 %v897, %v894
        %v952 = vpack.c.b16 %v898, %v895
        %v953 = vpack.c.b16 %v899, %v896
        %vm1008 = vcmask 261120
        %v1010 = vsel %vm1008, %v703, 0
        %1012 = vmatprep.subr.bf16.mxu0 %v922
        %1013 = vmatpush1.bf16.msra.mxu0 %v921
        %1014 = vmatprep.subr.bf16.mxu0 %v919
        %1015 = vmatpush1.bf16.msra.mxu0 %v918
        %1016 = vmatprep.subr.bf16.mxu0 %v916
        %1017 = vmatpush1.bf16.msra.mxu0 %v915
        %1018 = vmatprep.subr.bf16.mxu0 %v913
        %1019 = vmatpush1.bf16.msra.mxu0 %v912
        %1020 = vmatprep.subr.bf16.mxu0 %v910
        %1021 = vmatpush1.bf16.msra.mxu0 %v909
        %1022 = vmatprep.subr.bf16.mxu0 %v907
        %1023 = vmatpush1.bf16.msra.mxu0 %v906
        %1024 = vmatprep.subr.bf16.mxu0 %v904
        %1025 = vmatpush1.bf16.msra.mxu0 %v903
        %1026 = vmatprep.subr.bf16.mxu0 %v901
        %1027 = vmatpush1.bf16.msra.mxu0 %v900
        %1028 = vmatprep.subr.bf16.mxu0 %v946
        %1029 = vmatpush2.bf16.msra.mxu0 %v945
        %1030 = vmatprep.subr.bf16.mxu0 %v943
        %1031 = vmatpush2.bf16.msra.mxu0 %v942
        %1032 = vmatprep.subr.bf16.mxu0 %v940
        %1033 = vmatpush2.bf16.msra.mxu0 %v939
        %1034 = vmatprep.subr.bf16.mxu0 %v937
        %1035 = vmatpush2.bf16.msra.mxu0 %v936
        %1036 = vmatprep.subr.bf16.mxu0 %v934
        %1037 = vmatpush2.bf16.msra.mxu0 %v933
        %1038 = vmatprep.subr.bf16.mxu0 %v931
        %1039 = vmatpush2.bf16.msra.mxu0 %v930
        %1040 = vmatprep.subr.bf16.mxu0 %v928
        %1041 = vmatpush2.bf16.msra.mxu0 %v927
        %1042 = vmatprep.subr.bf16.mxu0 %v925
        %1043 = vmatpush2.bf16.msra.mxu0 %v924
        %1044 = vmatprep.mubr.bf16.mxu0 %v702
        %1045 = vmatmul.mubr.bf16.gmra.mxu0 %v701
        %v1046 = vpop.f32.mrf.mxu0
        %v1047 = vadd.f32 %v708, %v1046
        %v1048 = vpop.f32.mrf.mxu0
        %v1049 = vadd.f32 %v712, %v1048
        %v1050 = vpop.f32.mrf.mxu0
        %v1051 = vpop.f32.mrf.mxu0
        %1052 = vdwg.mxu0
        %1053 = vmatprep.subr.bf16.mxu0 0
        %1054 = vmatpush1.bf16.msra.mxu0 0
        %1055 = vmatprep.subr.bf16.mxu0 0
        %1056 = vmatpush1.bf16.msra.mxu0 0
        %1057 = vmatprep.subr.bf16.mxu0 0
        %1058 = vmatpush1.bf16.msra.mxu0 0
        %1059 = vmatprep.subr.bf16.mxu0 0
        %1060 = vmatpush1.bf16.msra.mxu0 0
        %1061 = vmatprep.subr.bf16.mxu0 0
        %1062 = vmatpush1.bf16.msra.mxu0 0
        %1063 = vmatprep.subr.bf16.mxu0 0
        %1064 = vmatpush1.bf16.msra.mxu0 0
        %1065 = vmatprep.subr.bf16.mxu0 %v952
        %1066 = vmatpush1.bf16.msra.mxu0 %v951
        %1067 = vmatprep.subr.bf16.mxu0 %v949
        %1068 = vmatpush1.bf16.msra.mxu0 %v948
        %1069 = vmatprep.subr.bf16.mxu0 0
        %1070 = vmatpush2.bf16.msra.mxu0 0
        %1071 = vmatprep.subr.bf16.mxu0 0
        %1072 = vmatpush2.bf16.msra.mxu0 0
        %1073 = vmatprep.subr.bf16.mxu0 0
        %1074 = vmatpush2.bf16.msra.mxu0 0
        %1075 = vmatprep.subr.bf16.mxu0 0
        %1076 = vmatpush2.bf16.msra.mxu0 0
        %1077 = vmatprep.subr.bf16.mxu0 0
        %1078 = vmatpush2.bf16.msra.mxu0 0
        %1079 = vmatprep.subr.bf16.mxu0 0
        %1080 = vmatpush2.bf16.msra.mxu0 0
        %1081 = vmatprep.subr.bf16.mxu0 0
        %1082 = vmatpush2.bf16.msra.mxu0 0
        %1083 = vmatprep.subr.bf16.mxu0 0
        %1084 = vmatpush2.bf16.msra.mxu0 0
        %1085 = vmatprep.mubr.bf16.mxu0 0
        %1086 = vmatmul.mubr.bf16.gmra.mxu0 %v1010
        %v1087 = vpop.f32.mrf.mxu0
        %v1088 = vadd.f32 %v1047, %v1087
        %v1089 = vpop.f32.mrf.mxu0
        %v1090 = vadd.f32 %v1049, %v1089
        %v1091 = vpop.f32.mrf.mxu0
        %v1092 = vpop.f32.mrf.mxu0
        %1093 = vdwg.mxu0
        %1094 = vmatprep.subr.bf16.mxu0 0
        %1095 = vmatpush1.bf16.msra.mxu0 %v923
        %1096 = vmatprep.subr.bf16.mxu0 0
        %1097 = vmatpush1.bf16.msra.mxu0 %v920
        %1098 = vmatprep.subr.bf16.mxu0 0
        %1099 = vmatpush1.bf16.msra.mxu0 %v917
        %1100 = vmatprep.subr.bf16.mxu0 0
        %1101 = vmatpush1.bf16.msra.mxu0 %v914
        %1102 = vmatprep.subr.bf16.mxu0 0
        %1103 = vmatpush1.bf16.msra.mxu0 %v911
        %1104 = vmatprep.subr.bf16.mxu0 0
        %1105 = vmatpush1.bf16.msra.mxu0 %v908
        %1106 = vmatprep.subr.bf16.mxu0 0
        %1107 = vmatpush1.bf16.msra.mxu0 %v905
        %1108 = vmatprep.subr.bf16.mxu0 0
        %1109 = vmatpush1.bf16.msra.mxu0 %v902
        %1110 = vmatprep.subr.bf16.mxu0 0
        %1111 = vmatpush2.bf16.msra.mxu0 %v947
        %1112 = vmatprep.subr.bf16.mxu0 0
        %1113 = vmatpush2.bf16.msra.mxu0 %v944
        %1114 = vmatprep.subr.bf16.mxu0 0
        %1115 = vmatpush2.bf16.msra.mxu0 %v941
        %1116 = vmatprep.subr.bf16.mxu0 0
        %1117 = vmatpush2.bf16.msra.mxu0 %v938
        %1118 = vmatprep.subr.bf16.mxu0 0
        %1119 = vmatpush2.bf16.msra.mxu0 %v935
        %1120 = vmatprep.subr.bf16.mxu0 0
        %1121 = vmatpush2.bf16.msra.mxu0 %v932
        %1122 = vmatprep.subr.bf16.mxu0 0
        %1123 = vmatpush2.bf16.msra.mxu0 %v929
        %1124 = vmatprep.subr.bf16.mxu0 0
        %1125 = vmatpush2.bf16.msra.mxu0 %v926
        %1126 = vmatprep.mubr.bf16.mxu0 %v702
        %1127 = vmatmul.mubr.bf16.gmra.mxu0 %v701
        %v1128 = vpop.f32.mrf.mxu0
        %v1129 = vadd.f32 %v716, %v1128
        %v1130 = vpop.f32.mrf.mxu0
        %v1131 = vpop.f32.mrf.mxu0
        %v1132 = vpop.f32.mrf.mxu0
        %1133 = vdwg.mxu0
        %1134 = vmatprep.subr.bf16.mxu0 0
        %1135 = vmatpush1.bf16.msra.mxu0 0
        %1136 = vmatprep.subr.bf16.mxu0 0
        %1137 = vmatpush1.bf16.msra.mxu0 0
        %1138 = vmatprep.subr.bf16.mxu0 0
        %1139 = vmatpush1.bf16.msra.mxu0 0
        %1140 = vmatprep.subr.bf16.mxu0 0
        %1141 = vmatpush1.bf16.msra.mxu0 0
        %1142 = vmatprep.subr.bf16.mxu0 0
        %1143 = vmatpush1.bf16.msra.mxu0 0
        %1144 = vmatprep.subr.bf16.mxu0 0
        %1145 = vmatpush1.bf16.msra.mxu0 0
        %1146 = vmatprep.subr.bf16.mxu0 0
        %1147 = vmatpush1.bf16.msra.mxu0 %v953
        %1148 = vmatprep.subr.bf16.mxu0 0
        %1149 = vmatpush1.bf16.msra.mxu0 %v950
        %1150 = vmatprep.subr.bf16.mxu0 0
        %1151 = vmatpush2.bf16.msra.mxu0 0
        %1152 = vmatprep.subr.bf16.mxu0 0
        %1153 = vmatpush2.bf16.msra.mxu0 0
        %1154 = vmatprep.subr.bf16.mxu0 0
        %1155 = vmatpush2.bf16.msra.mxu0 0
        %1156 = vmatprep.subr.bf16.mxu0 0
        %1157 = vmatpush2.bf16.msra.mxu0 0
        %1158 = vmatprep.subr.bf16.mxu0 0
        %1159 = vmatpush2.bf16.msra.mxu0 0
        %1160 = vmatprep.subr.bf16.mxu0 0
        %1161 = vmatpush2.bf16.msra.mxu0 0
        %1162 = vmatprep.subr.bf16.mxu0 0
        %1163 = vmatpush2.bf16.msra.mxu0 0
        %1164 = vmatprep.subr.bf16.mxu0 0
        %1165 = vmatpush2.bf16.msra.mxu0 0
        %1166 = vmatprep.mubr.bf16.mxu0 0
        %1167 = vmatmul.mubr.bf16.gmra.mxu0 %v1010
        %v1168 = vpop.f32.mrf.mxu0
        %v1169 = vadd.f32 %v1129, %v1168
        %v1170 = vpop.f32.mrf.mxu0
        %v1171 = vpop.f32.mrf.mxu0
        %v1172 = vpop.f32.mrf.mxu0
        %1173 = vdwg.mxu0
        %v1174 = vmax.f32 %v1088, 0.0
        %v1175 = vmax.f32 %v1090, 0.0
        %v1176 = vmax.f32 %v1169, 0.0
        %s1177 = scalar_lea.vmem [#allocation7], 432
        %v1178 = vld [vmem:[%s1177] sm:$0xff]
        %v1179 = vld [vmem:[%s1177 + $0x8] sm:$0xf]
        %v1180 = vld [vmem:[%s1177 + $0xc] sm:$0xff]
        %v1181 = vld [vmem:[%s1177 + $0x14] sm:$0xf]
        %v1182 = vld [vmem:[%s1177 + $0x18] sm:$0xff]
        %v1183 = vld [vmem:[%s1177 + $0x20] sm:$0xf]
        %v1184 = vld [vmem:[%s1177 + $0x24] sm:$0xff]
        %v1185 = vld [vmem:[%s1177 + $0x2c] sm:$0xf]
        %v1186 = vld [vmem:[%s1177 + $0x30] sm:$0xff]
        %v1187 = vld [vmem:[%s1177 + $0x38] sm:$0xf]
        %v1188 = vld [vmem:[%s1177 + $0x3c] sm:$0xff]
        %v1189 = vld [vmem:[%s1177 + $0x44] sm:$0xf]
        %v1190 = vld [vmem:[%s1177 + $0x48] sm:$0xff]
        %v1191 = vld [vmem:[%s1177 + $0x50] sm:$0xf]
        %v1192 = vld [vmem:[%s1177 + $0x54] sm:$0xff]
        %v1193 = vld [vmem:[%s1177 + $0x5c] sm:$0xf]
        %v1194 = vld [vmem:[%s1177 + $0x60] sm:$0xff]
        %v1195 = vld [vmem:[%s1177 + $0x68] sm:$0xf]
        %v1196 = vld [vmem:[%s1177 + $0x6c] sm:$0xff]
        %v1197 = vld [vmem:[%s1177 + $0x74] sm:$0xf]
        %v1198 = vld [vmem:[%s1177 + $0x78] sm:$0xff]
        %v1199 = vld [vmem:[%s1177 + $0x80] sm:$0xf]
        %v1200 = vld [vmem:[%s1177 + $0x84] sm:$0xff]
        %v1201 = vld [vmem:[%s1177 + $0x8c] sm:$0xf]
        %v1202 = vld [vmem:[%s1177 + $0x90] sm:$0xff]
        %v1203 = vld [vmem:[%s1177 + $0x98] sm:$0xf]
        %v1204 = vld [vmem:[%s1177 + $0x9c] sm:$0xff]
        %v1205 = vld [vmem:[%s1177 + $0xa4] sm:$0xf]
        %v1206 = vld [vmem:[%s1177 + $0xa8] sm:$0xff]
        %v1207 = vld [vmem:[%s1177 + $0xb0] sm:$0xf]
        %v1208 = vld [vmem:[%s1177 + $0xb4] sm:$0xff]
        %v1209 = vld [vmem:[%s1177 + $0xbc] sm:$0xf]
        %v1210 = vld [vmem:[%s1177 + $0xc0] sm:$0xff]
        %v1211 = vld [vmem:[%s1177 + $0xc8] sm:$0xf]
        %v1212 = vld [vmem:[%s1177 + $0xcc] sm:$0xff]
        %v1213 = vld [vmem:[%s1177 + $0xd4] sm:$0xf]
        %v1214 = vld [vmem:[%s1177 + $0xd8] sm:$0xff]
        %v1215 = vld [vmem:[%s1177 + $0xe0] sm:$0xf]
        %v1216 = vld [vmem:[%s1177 + $0xe4] sm:$0xff]
        %v1217 = vld [vmem:[%s1177 + $0xec] sm:$0xf]
        %v1218 = vld [vmem:[%s1177 + $0xf0] sm:$0xff]
        %v1219 = vld [vmem:[%s1177 + $0xf8] sm:$0xf]
        %v1220 = vld [vmem:[%s1177 + $0xfc] sm:$0xff]
        %v1221 = vld [vmem:[%s1177 + $0x104] sm:$0xf]
        %v1222 = vld [vmem:[%s1177 + $0x108] sm:$0xff]
        %v1223 = vld [vmem:[%s1177 + $0x110] sm:$0xf]
        %v1224 = vld [vmem:[%s1177 + $0x114] sm:$0xff]
        %v1225 = vld [vmem:[%s1177 + $0x11c] sm:$0xf]
        %v1226 = vld [vmem:[%s1177 + $0x120] sm:$0xff]
        %v1227 = vld [vmem:[%s1177 + $0x128] sm:$0xf]
        %v1228 = vld [vmem:[%s1177 + $0x12c] sm:$0xff]
        %v1229 = vld [vmem:[%s1177 + $0x134] sm:$0xf]
        %v1230 = vld [vmem:[%s1177 + $0x138] sm:$0xff]
        %v1231 = vld [vmem:[%s1177 + $0x140] sm:$0xf]
        %v1232 = vld [vmem:[%s1177 + $0x144] sm:$0xff]
        %v1233 = vld [vmem:[%s1177 + $0x14c] sm:$0xf]
        %v1234 = vld [vmem:[%s1177 + $0x150] sm:$0xff]
        %v1235 = vld [vmem:[%s1177 + $0x158] sm:$0xf]
        %v1236 = vld [vmem:[%s1177 + $0x15c] sm:$0xff]
        %v1237 = vld [vmem:[%s1177 + $0x164] sm:$0xf]
        %v1238 = vld [vmem:[%s1177 + $0x168] sm:$0xff]
        %v1239 = vld [vmem:[%s1177 + $0x170] sm:$0xf]
        %v1240 = vld [vmem:[%s1177 + $0x174] sm:$0xff]
        %v1241 = vld [vmem:[%s1177 + $0x17c] sm:$0xf]
        %v1242 = vld [vmem:[%s1177 + $0x180] sm:$0xff]
        %v1243 = vld [vmem:[%s1177 + $0x188] sm:$0xf]
        %v1244 = vld [vmem:[%s1177 + $0x18c] sm:$0xff]
        %v1245 = vld [vmem:[%s1177 + $0x194] sm:$0xf]
        %v1246 = vld [vmem:[%s1177 + $0x198] sm:$0xff]
        %v1247 = vld [vmem:[%s1177 + $0x1a0] sm:$0xf]
        %v1248 = vld [vmem:[%s1177 + $0x1a4] sm:$0xff]
        %v1249 = vld [vmem:[%s1177 + $0x1ac] sm:$0xf]
        %s1250 = scalar_lea.vmem [#allocation10], 2
        %v1251 = vld [vmem:[%s1250] ss:$8 sm:$0x7]
        %v1252 = vpack.c.bf16 %v1174, %v1174
        %v1253 = vpack.c.bf16 %v1175, %v1175
        %v1254 = vpack.c.bf16 %v1176, %v1176
        %v1256 = vlaneseq
        %v1257 = vshrl.u32 %v1256, 7
        %v1258 = vsub.s32 0, %v1257
        %v1259 = vrot.slane %v1251, %v1258
        %v1260 = vlaneseq
        %v1261 = vshrl.u32 %v1260, 7
        %v1262 = vsub.s32 1, %v1261
        %v1263 = vrot.slane %v1251, %v1262
        %v1264 = vlaneseq
        %v1265 = vshrl.u32 %v1264, 7
        %v1266 = vsub.s32 2, %v1265
        %v1267 = vrot.slane %v1251, %v1266
        %v1343 = vunpack.c.l.b16 %v1178
        %v1344 = vunpack.c.h.b16 %v1178
        %v1345 = vunpack.c.l.b16 %v1179
        %v1346 = vunpack.c.l.b16 %v1180
        %v1347 = vunpack.c.h.b16 %v1180
        %v1348 = vunpack.c.l.b16 %v1181
        %v1349 = vunpack.c.l.b16 %v1182
        %v1350 = vunpack.c.h.b16 %v1182
        %v1351 = vunpack.c.l.b16 %v1183
        %v1352 = vunpack.c.l.b16 %v1184
        %v1353 = vunpack.c.h.b16 %v1184
        %v1354 = vunpack.c.l.b16 %v1185
        %v1355 = vunpack.c.l.b16 %v1186
        %v1356 = vunpack.c.h.b16 %v1186
        %v1357 = vunpack.c.l.b16 %v1187
        %v1358 = vunpack.c.l.b16 %v1188
        %v1359 = vunpack.c.h.b16 %v1188
        %v1360 = vunpack.c.l.b16 %v1189
        %v1361 = vunpack.c.l.b16 %v1190
        %v1362 = vunpack.c.h.b16 %v1190
        %v1363 = vunpack.c.l.b16 %v1191
        %v1364 = vunpack.c.l.b16 %v1192
        %v1365 = vunpack.c.h.b16 %v1192
        %v1366 = vunpack.c.l.b16 %v1193
        %v1367 = vunpack.c.l.b16 %v1194
        %v1368 = vunpack.c.h.b16 %v1194
        %v1369 = vunpack.c.l.b16 %v1195
        %v1370 = vunpack.c.l.b16 %v1196
        %v1371 = vunpack.c.h.b16 %v1196
        %v1372 = vunpack.c.l.b16 %v1197
        %v1373 = vunpack.c.l.b16 %v1198
        %v1374 = vunpack.c.h.b16 %v1198
        %v1375 = vunpack.c.l.b16 %v1199
        %v1376 = vunpack.c.l.b16 %v1200
        %v1377 = vunpack.c.h.b16 %v1200
        %v1378 = vunpack.c.l.b16 %v1201
        %v1379 = vunpack.c.l.b16 %v1202
        %v1380 = vunpack.c.h.b16 %v1202
        %v1381 = vunpack.c.l.b16 %v1203
        %v1382 = vunpack.c.l.b16 %v1204
        %v1383 = vunpack.c.h.b16 %v1204
        %v1384 = vunpack.c.l.b16 %v1205
        %v1385 = vunpack.c.l.b16 %v1206
        %v1386 = vunpack.c.h.b16 %v1206
        %v1387 = vunpack.c.l.b16 %v1207
        %v1388 = vunpack.c.l.b16 %v1208
        %v1389 = vunpack.c.h.b16 %v1208
        %v1390 = vunpack.c.l.b16 %v1209
        %v1391 = vunpack.c.l.b16 %v1210
        %v1392 = vunpack.c.h.b16 %v1210
        %v1393 = vunpack.c.l.b16 %v1211
        %v1394 = vunpack.c.l.b16 %v1212
        %v1395 = vunpack.c.h.b16 %v1212
        %v1396 = vunpack.c.l.b16 %v1213
        %v1397 = vunpack.c.l.b16 %v1214
        %v1398 = vunpack.c.h.b16 %v1214
        %v1399 = vunpack.c.l.b16 %v1215
        %v1400 = vunpack.c.l.b16 %v1216
        %v1401 = vunpack.c.h.b16 %v1216
        %v1402 = vunpack.c.l.b16 %v1217
        %v1403 = vunpack.c.l.b16 %v1218
        %v1404 = vunpack.c.h.b16 %v1218
        %v1405 = vunpack.c.l.b16 %v1219
        %v1406 = vunpack.c.l.b16 %v1220
        %v1407 = vunpack.c.h.b16 %v1220
        %v1408 = vunpack.c.l.b16 %v1221
        %v1409 = vunpack.c.l.b16 %v1222
        %v1410 = vunpack.c.h.b16 %v1222
        %v1411 = vunpack.c.l.b16 %v1223
        %v1412 = vunpack.c.l.b16 %v1224
        %v1413 = vunpack.c.h.b16 %v1224
        %v1414 = vunpack.c.l.b16 %v1225
        %v1415 = vunpack.c.l.b16 %v1226
        %v1416 = vunpack.c.h.b16 %v1226
        %v1417 = vunpack.c.l.b16 %v1227
        %v1418 = vunpack.c.l.b16 %v1228
        %v1419 = vunpack.c.h.b16 %v1228
        %v1420 = vunpack.c.l.b16 %v1229
        %v1421 = vunpack.c.l.b16 %v1230
        %v1422 = vunpack.c.h.b16 %v1230
        %v1423 = vunpack.c.l.b16 %v1231
        %v1424 = vunpack.c.l.b16 %v1232
        %v1425 = vunpack.c.h.b16 %v1232
        %v1426 = vunpack.c.l.b16 %v1233
        %v1427 = vunpack.c.l.b16 %v1234
        %v1428 = vunpack.c.h.b16 %v1234
        %v1429 = vunpack.c.l.b16 %v1235
        %v1430 = vunpack.c.l.b16 %v1236
        %v1431 = vunpack.c.h.b16 %v1236
        %v1432 = vunpack.c.l.b16 %v1237
        %v1433 = vunpack.c.l.b16 %v1238
        %v1434 = vunpack.c.h.b16 %v1238
        %v1435 = vunpack.c.l.b16 %v1239
        %v1436 = vunpack.c.l.b16 %v1240
        %v1437 = vunpack.c.h.b16 %v1240
        %v1438 = vunpack.c.l.b16 %v1241
        %v1439 = vunpack.c.l.b16 %v1242
        %v1440 = vunpack.c.h.b16 %v1242
        %v1441 = vunpack.c.l.b16 %v1243
        %v1442 = vunpack.c.l.b16 %v1244
        %v1443 = vunpack.c.h.b16 %v1244
        %v1444 = vunpack.c.l.b16 %v1245
        %v1445 = vunpack.c.l.b16 %v1246
        %v1446 = vunpack.c.h.b16 %v1246
        %v1447 = vunpack.c.l.b16 %v1247
        %v1448 = vunpack.c.l.b16 %v1248
        %v1449 = vunpack.c.h.b16 %v1248
        %v1450 = vunpack.c.l.b16 %v1249
        %v1451 = vpack.c.b16 %v1346, %v1343
        %v1452 = vpack.c.b16 %v1347, %v1344
        %v1453 = vpack.c.b16 %v1348, %v1345
        %v1454 = vpack.c.b16 %v1352, %v1349
        %v1455 = vpack.c.b16 %v1353, %v1350
        %v1456 = vpack.c.b16 %v1354, %v1351
        %v1457 = vpack.c.b16 %v1358, %v1355
        %v1458 = vpack.c.b16 %v1359, %v1356
        %v1459 = vpack.c.b16 %v1360, %v1357
        %v1460 = vpack.c.b16 %v1364, %v1361
        %v1461 = vpack.c.b16 %v1365, %v1362
        %v1462 = vpack.c.b16 %v1366, %v1363
        %v1463 = vpack.c.b16 %v1370, %v1367
        %v1464 = vpack.c.b16 %v1371, %v1368
        %v1465 = vpack.c.b16 %v1372, %v1369
        %v1466 = vpack.c.b16 %v1376, %v1373
        %v1467 = vpack.c.b16 %v1377, %v1374
        %v1468 = vpack.c.b16 %v1378, %v1375
        %v1469 = vpack.c.b16 %v1382, %v1379
        %v1470 = vpack.c.b16 %v1383, %v1380
        %v1471 = vpack.c.b16 %v1384, %v1381
        %v1472 = vpack.c.b16 %v1388, %v1385
        %v1473 = vpack.c.b16 %v1389, %v1386
        %v1474 = vpack.c.b16 %v1390, %v1387
        %v1475 = vpack.c.b16 %v1394, %v1391
        %v1476 = vpack.c.b16 %v1395, %v1392
        %v1477 = vpack.c.b16 %v1396, %v1393
        %v1478 = vpack.c.b16 %v1400, %v1397
        %v1479 = vpack.c.b16 %v1401, %v1398
        %v1480 = vpack.c.b16 %v1402, %v1399
        %v1481 = vpack.c.b16 %v1406, %v1403
        %v1482 = vpack.c.b16 %v1407, %v1404
        %v1483 = vpack.c.b16 %v1408, %v1405
        %v1484 = vpack.c.b16 %v1412, %v1409
        %v1485 = vpack.c.b16 %v1413, %v1410
        %v1486 = vpack.c.b16 %v1414, %v1411
        %v1487 = vpack.c.b16 %v1418, %v1415
        %v1488 = vpack.c.b16 %v1419, %v1416
        %v1489 = vpack.c.b16 %v1420, %v1417
        %v1490 = vpack.c.b16 %v1424, %v1421
        %v1491 = vpack.c.b16 %v1425, %v1422
        %v1492 = vpack.c.b16 %v1426, %v1423
        %v1493 = vpack.c.b16 %v1430, %v1427
        %v1494 = vpack.c.b16 %v1431, %v1428
        %v1495 = vpack.c.b16 %v1432, %v1429
        %v1496 = vpack.c.b16 %v1436, %v1433
        %v1497 = vpack.c.b16 %v1437, %v1434
        %v1498 = vpack.c.b16 %v1438, %v1435
        %v1499 = vpack.c.b16 %v1442, %v1439
        %v1500 = vpack.c.b16 %v1443, %v1440
        %v1501 = vpack.c.b16 %v1444, %v1441
        %v1502 = vpack.c.b16 %v1448, %v1445
        %v1503 = vpack.c.b16 %v1449, %v1446
        %v1504 = vpack.c.b16 %v1450, %v1447
        %v1560 = vsel %vm1008, %v1254, 0
        %1562 = vmatprep.subr.bf16.mxu0 %v1473
        %1563 = vmatpush1.bf16.msra.mxu0 %v1472
        %1564 = vmatprep.subr.bf16.mxu0 %v1470
        %1565 = vmatpush1.bf16.msra.mxu0 %v1469
        %1566 = vmatprep.subr.bf16.mxu0 %v1467
        %1567 = vmatpush1.bf16.msra.mxu0 %v1466
        %1568 = vmatprep.subr.bf16.mxu0 %v1464
        %1569 = vmatpush1.bf16.msra.mxu0 %v1463
        %1570 = vmatprep.subr.bf16.mxu0 %v1461
        %1571 = vmatpush1.bf16.msra.mxu0 %v1460
        %1572 = vmatprep.subr.bf16.mxu0 %v1458
        %1573 = vmatpush1.bf16.msra.mxu0 %v1457
        %1574 = vmatprep.subr.bf16.mxu0 %v1455
        %1575 = vmatpush1.bf16.msra.mxu0 %v1454
        %1576 = vmatprep.subr.bf16.mxu0 %v1452
        %1577 = vmatpush1.bf16.msra.mxu0 %v1451
        %1578 = vmatprep.subr.bf16.mxu0 %v1497
        %1579 = vmatpush2.bf16.msra.mxu0 %v1496
        %1580 = vmatprep.subr.bf16.mxu0 %v1494
        %1581 = vmatpush2.bf16.msra.mxu0 %v1493
        %1582 = vmatprep.subr.bf16.mxu0 %v1491
        %1583 = vmatpush2.bf16.msra.mxu0 %v1490
        %1584 = vmatprep.subr.bf16.mxu0 %v1488
        %1585 = vmatpush2.bf16.msra.mxu0 %v1487
        %1586 = vmatprep.subr.bf16.mxu0 %v1485
        %1587 = vmatpush2.bf16.msra.mxu0 %v1484
        %1588 = vmatprep.subr.bf16.mxu0 %v1482
        %1589 = vmatpush2.bf16.msra.mxu0 %v1481
        %1590 = vmatprep.subr.bf16.mxu0 %v1479
        %1591 = vmatpush2.bf16.msra.mxu0 %v1478
        %1592 = vmatprep.subr.bf16.mxu0 %v1476
        %1593 = vmatpush2.bf16.msra.mxu0 %v1475
        %1594 = vmatprep.mubr.bf16.mxu0 %v1253
        %1595 = vmatmul.mubr.bf16.gmra.mxu0 %v1252
        %v1596 = vpop.f32.mrf.mxu0
        %v1597 = vadd.f32 %v1259, %v1596
        %v1598 = vpop.f32.mrf.mxu0
        %v1599 = vadd.f32 %v1263, %v1598
        %v1600 = vpop.f32.mrf.mxu0
        %v1601 = vpop.f32.mrf.mxu0
        %1602 = vdwg.mxu0
        %1603 = vmatprep.subr.bf16.mxu0 0
        %1604 = vmatpush1.bf16.msra.mxu0 0
        %1605 = vmatprep.subr.bf16.mxu0 0
        %1606 = vmatpush1.bf16.msra.mxu0 0
        %1607 = vmatprep.subr.bf16.mxu0 0
        %1608 = vmatpush1.bf16.msra.mxu0 0
        %1609 = vmatprep.subr.bf16.mxu0 0
        %1610 = vmatpush1.bf16.msra.mxu0 0
        %1611 = vmatprep.subr.bf16.mxu0 0
        %1612 = vmatpush1.bf16.msra.mxu0 0
        %1613 = vmatprep.subr.bf16.mxu0 0
        %1614 = vmatpush1.bf16.msra.mxu0 0
        %1615 = vmatprep.subr.bf16.mxu0 %v1503
        %1616 = vmatpush1.bf16.msra.mxu0 %v1502
        %1617 = vmatprep.subr.bf16.mxu0 %v1500
        %1618 = vmatpush1.bf16.msra.mxu0 %v1499
        %1619 = vmatprep.subr.bf16.mxu0 0
        %1620 = vmatpush2.bf16.msra.mxu0 0
        %1621 = vmatprep.subr.bf16.mxu0 0
        %1622 = vmatpush2.bf16.msra.mxu0 0
        %1623 = vmatprep.subr.bf16.mxu0 0
        %1624 = vmatpush2.bf16.msra.mxu0 0
        %1625 = vmatprep.subr.bf16.mxu0 0
        %1626 = vmatpush2.bf16.msra.mxu0 0
        %1627 = vmatprep.subr.bf16.mxu0 0
        %1628 = vmatpush2.bf16.msra.mxu0 0
        %1629 = vmatprep.subr.bf16.mxu0 0
        %1630 = vmatpush2.bf16.msra.mxu0 0
        %1631 = vmatprep.subr.bf16.mxu0 0
        %1632 = vmatpush2.bf16.msra.mxu0 0
        %1633 = vmatprep.subr.bf16.mxu0 0
        %1634 = vmatpush2.bf16.msra.mxu0 0
        %1635 = vmatprep.mubr.bf16.mxu0 0
        %1636 = vmatmul.mubr.bf16.gmra.mxu0 %v1560
        %v1637 = vpop.f32.mrf.mxu0
        %v1638 = vadd.f32 %v1597, %v1637
        %v1639 = vpop.f32.mrf.mxu0
        %v1640 = vadd.f32 %v1599, %v1639
        %v1641 = vpop.f32.mrf.mxu0
        %v1642 = vpop.f32.mrf.mxu0
        %1643 = vdwg.mxu0
        %1644 = vmatprep.subr.bf16.mxu0 0
        %1645 = vmatpush1.bf16.msra.mxu0 %v1474
        %1646 = vmatprep.subr.bf16.mxu0 0
        %1647 = vmatpush1.bf16.msra.mxu0 %v1471
        %1648 = vmatprep.subr.bf16.mxu0 0
        %1649 = vmatpush1.bf16.msra.mxu0 %v1468
        %1650 = vmatprep.subr.bf16.mxu0 0
        %1651 = vmatpush1.bf16.msra.mxu0 %v1465
        %1652 = vmatprep.subr.bf16.mxu0 0
        %1653 = vmatpush1.bf16.msra.mxu0 %v1462
        %1654 = vmatprep.subr.bf16.mxu0 0
        %1655 = vmatpush1.bf16.msra.mxu0 %v1459
        %1656 = vmatprep.subr.bf16.mxu0 0
        %1657 = vmatpush1.bf16.msra.mxu0 %v1456
        %1658 = vmatprep.subr.bf16.mxu0 0
        %1659 = vmatpush1.bf16.msra.mxu0 %v1453
        %1660 = vmatprep.subr.bf16.mxu0 0
        %1661 = vmatpush2.bf16.msra.mxu0 %v1498
        %1662 = vmatprep.subr.bf16.mxu0 0
        %1663 = vmatpush2.bf16.msra.mxu0 %v1495
        %1664 = vmatprep.subr.bf16.mxu0 0
        %1665 = vmatpush2.bf16.msra.mxu0 %v1492
        %1666 = vmatprep.subr.bf16.mxu0 0
        %1667 = vmatpush2.bf16.msra.mxu0 %v1489
        %1668 = vmatprep.subr.bf16.mxu0 0
        %1669 = vmatpush2.bf16.msra.mxu0 %v1486
        %1670 = vmatprep.subr.bf16.mxu0 0
        %1671 = vmatpush2.bf16.msra.mxu0 %v1483
        %1672 = vmatprep.subr.bf16.mxu0 0
        %1673 = vmatpush2.bf16.msra.mxu0 %v1480
        %1674 = vmatprep.subr.bf16.mxu0 0
        %1675 = vmatpush2.bf16.msra.mxu0 %v1477
        %1676 = vmatprep.mubr.bf16.mxu0 %v1253
        %1677 = vmatmul.mubr.bf16.gmra.mxu0 %v1252
        %v1678 = vpop.f32.mrf.mxu0
        %v1679 = vadd.f32 %v1267, %v1678
        %v1680 = vpop.f32.mrf.mxu0
        %v1681 = vpop.f32.mrf.mxu0
        %v1682 = vpop.f32.mrf.mxu0
        %1683 = vdwg.mxu0
        %1684 = vmatprep.subr.bf16.mxu0 0
        %1685 = vmatpush1.bf16.msra.mxu0 0
        %1686 = vmatprep.subr.bf16.mxu0 0
        %1687 = vmatpush1.bf16.msra.mxu0 0
        %1688 = vmatprep.subr.bf16.mxu0 0
        %1689 = vmatpush1.bf16.msra.mxu0 0
        %1690 = vmatprep.subr.bf16.mxu0 0
        %1691 = vmatpush1.bf16.msra.mxu0 0
        %1692 = vmatprep.subr.bf16.mxu0 0
        %1693 = vmatpush1.bf16.msra.mxu0 0
        %1694 = vmatprep.subr.bf16.mxu0 0
        %1695 = vmatpush1.bf16.msra.mxu0 0
        %1696 = vmatprep.subr.bf16.mxu0 0
        %1697 = vmatpush1.bf16.msra.mxu0 %v1504
        %1698 = vmatprep.subr.bf16.mxu0 0
        %1699 = vmatpush1.bf16.msra.mxu0 %v1501
        %1700 = vmatprep.subr.bf16.mxu0 0
        %1701 = vmatpush2.bf16.msra.mxu0 0
        %1702 = vmatprep.subr.bf16.mxu0 0
        %1703 = vmatpush2.bf16.msra.mxu0 0
        %1704 = vmatprep.subr.bf16.mxu0 0
        %1705 = vmatpush2.bf16.msra.mxu0 0
        %1706 = vmatprep.subr.bf16.mxu0 0
        %1707 = vmatpush2.bf16.msra.mxu0 0
        %1708 = vmatprep.subr.bf16.mxu0 0
        %1709 = vmatpush2.bf16.msra.mxu0 0
        %1710 = vmatprep.subr.bf16.mxu0 0
        %1711 = vmatpush2.bf16.msra.mxu0 0
        %1712 = vmatprep.subr.bf16.mxu0 0
        %1713 = vmatpush2.bf16.msra.mxu0 0
        %1714 = vmatprep.subr.bf16.mxu0 0
        %1715 = vmatpush2.bf16.msra.mxu0 0
        %1716 = vmatprep.mubr.bf16.mxu0 0
        %1717 = vmatmul.mubr.bf16.gmra.mxu0 %v1560
        %v1718 = vpop.f32.mrf.mxu0
        %v1719 = vadd.f32 %v1679, %v1718
        %v1720 = vpop.f32.mrf.mxu0
        %v1721 = vpop.f32.mrf.mxu0
        %v1722 = vpop.f32.mrf.mxu0
        %1723 = vdwg.mxu0
        %v1724 = vmax.f32 %v1638, 0.0
        %v1725 = vmax.f32 %v1640, 0.0
        %v1726 = vmax.f32 %v1719, 0.0
        %s1727 = scalar_lea.vmem [#allocation7], 864
        %v1728 = vld [vmem:[%s1727] sm:$0xff]
        %v1729 = vld [vmem:[%s1727 + $0x8] sm:$0xf]
        %v1730 = vld [vmem:[%s1727 + $0xc] sm:$0xff]
        %v1731 = vld [vmem:[%s1727 + $0x14] sm:$0xf]
        %v1732 = vld [vmem:[%s1727 + $0x18] sm:$0xff]
        %v1733 = vld [vmem:[%s1727 + $0x20] sm:$0xf]
        %v1734 = vld [vmem:[%s1727 + $0x24] sm:$0xff]
        %v1735 = vld [vmem:[%s1727 + $0x2c] sm:$0xf]
        %v1736 = vld [vmem:[%s1727 + $0x30] sm:$0xff]
        %v1737 = vld [vmem:[%s1727 + $0x38] sm:$0xf]
        %v1738 = vld [vmem:[%s1727 + $0x3c] sm:$0xff]
        %v1739 = vld [vmem:[%s1727 + $0x44] sm:$0xf]
        %v1740 = vld [vmem:[%s1727 + $0x48] sm:$0xff]
        %v1741 = vld [vmem:[%s1727 + $0x50] sm:$0xf]
        %v1742 = vld [vmem:[%s1727 + $0x54] sm:$0xff]
        %v1743 = vld [vmem:[%s1727 + $0x5c] sm:$0xf]
        %v1744 = vld [vmem:[%s1727 + $0x60] sm:$0xff]
        %v1745 = vld [vmem:[%s1727 + $0x68] sm:$0xf]
        %v1746 = vld [vmem:[%s1727 + $0x6c] sm:$0xff]
        %v1747 = vld [vmem:[%s1727 + $0x74] sm:$0xf]
        %v1748 = vld [vmem:[%s1727 + $0x78] sm:$0xff]
        %v1749 = vld [vmem:[%s1727 + $0x80] sm:$0xf]
        %v1750 = vld [vmem:[%s1727 + $0x84] sm:$0xff]
        %v1751 = vld [vmem:[%s1727 + $0x8c] sm:$0xf]
        %v1752 = vld [vmem:[%s1727 + $0x90] sm:$0xff]
        %v1753 = vld [vmem:[%s1727 + $0x98] sm:$0xf]
        %v1754 = vld [vmem:[%s1727 + $0x9c] sm:$0xff]
        %v1755 = vld [vmem:[%s1727 + $0xa4] sm:$0xf]
        %v1756 = vld [vmem:[%s1727 + $0xa8] sm:$0xff]
        %v1757 = vld [vmem:[%s1727 + $0xb0] sm:$0xf]
        %v1758 = vld [vmem:[%s1727 + $0xb4] sm:$0xff]
        %v1759 = vld [vmem:[%s1727 + $0xbc] sm:$0xf]
        %v1760 = vld [vmem:[%s1727 + $0xc0] sm:$0xff]
        %v1761 = vld [vmem:[%s1727 + $0xc8] sm:$0xf]
        %v1762 = vld [vmem:[%s1727 + $0xcc] sm:$0xff]
        %v1763 = vld [vmem:[%s1727 + $0xd4] sm:$0xf]
        %v1764 = vld [vmem:[%s1727 + $0xd8] sm:$0xff]
        %v1765 = vld [vmem:[%s1727 + $0xe0] sm:$0xf]
        %v1766 = vld [vmem:[%s1727 + $0xe4] sm:$0xff]
        %v1767 = vld [vmem:[%s1727 + $0xec] sm:$0xf]
        %v1768 = vld [vmem:[%s1727 + $0xf0] sm:$0xff]
        %v1769 = vld [vmem:[%s1727 + $0xf8] sm:$0xf]
        %v1770 = vld [vmem:[%s1727 + $0xfc] sm:$0xff]
        %v1771 = vld [vmem:[%s1727 + $0x104] sm:$0xf]
        %v1772 = vld [vmem:[%s1727 + $0x108] sm:$0xff]
        %v1773 = vld [vmem:[%s1727 + $0x110] sm:$0xf]
        %v1774 = vld [vmem:[%s1727 + $0x114] sm:$0xff]
        %v1775 = vld [vmem:[%s1727 + $0x11c] sm:$0xf]
        %v1776 = vld [vmem:[%s1727 + $0x120] sm:$0xff]
        %v1777 = vld [vmem:[%s1727 + $0x128] sm:$0xf]
        %v1778 = vld [vmem:[%s1727 + $0x12c] sm:$0xff]
        %v1779 = vld [vmem:[%s1727 + $0x134] sm:$0xf]
        %v1780 = vld [vmem:[%s1727 + $0x138] sm:$0xff]
        %v1781 = vld [vmem:[%s1727 + $0x140] sm:$0xf]
        %v1782 = vld [vmem:[%s1727 + $0x144] sm:$0xff]
        %v1783 = vld [vmem:[%s1727 + $0x14c] sm:$0xf]
        %v1784 = vld [vmem:[%s1727 + $0x150] sm:$0xff]
        %v1785 = vld [vmem:[%s1727 + $0x158] sm:$0xf]
        %v1786 = vld [vmem:[%s1727 + $0x15c] sm:$0xff]
        %v1787 = vld [vmem:[%s1727 + $0x164] sm:$0xf]
        %v1788 = vld [vmem:[%s1727 + $0x168] sm:$0xff]
        %v1789 = vld [vmem:[%s1727 + $0x170] sm:$0xf]
        %v1790 = vld [vmem:[%s1727 + $0x174] sm:$0xff]
        %v1791 = vld [vmem:[%s1727 + $0x17c] sm:$0xf]
        %v1792 = vld [vmem:[%s1727 + $0x180] sm:$0xff]
        %v1793 = vld [vmem:[%s1727 + $0x188] sm:$0xf]
        %v1794 = vld [vmem:[%s1727 + $0x18c] sm:$0xff]
        %v1795 = vld [vmem:[%s1727 + $0x194] sm:$0xf]
        %v1796 = vld [vmem:[%s1727 + $0x198] sm:$0xff]
        %v1797 = vld [vmem:[%s1727 + $0x1a0] sm:$0xf]
        %v1798 = vld [vmem:[%s1727 + $0x1a4] sm:$0xff]
        %v1799 = vld [vmem:[%s1727 + $0x1ac] sm:$0xf]
        %s1800 = scalar_lea.vmem [#allocation10], 3
        %v1801 = vld [vmem:[%s1800] ss:$8 sm:$0x7]
        %v1802 = vpack.c.bf16 %v1724, %v1724
        %v1803 = vpack.c.bf16 %v1725, %v1725
        %v1804 = vpack.c.bf16 %v1726, %v1726
        %v1806 = vlaneseq
        %v1807 = vshrl.u32 %v1806, 7
        %v1808 = vsub.s32 0, %v1807
        %v1809 = vrot.slane %v1801, %v1808
        %v1810 = vlaneseq
        %v1811 = vshrl.u32 %v1810, 7
        %v1812 = vsub.s32 1, %v1811
        %v1813 = vrot.slane %v1801, %v1812
        %v1814 = vlaneseq
        %v1815 = vshrl.u32 %v1814, 7
        %v1816 = vsub.s32 2, %v1815
        %v1817 = vrot.slane %v1801, %v1816
        %v1893 = vunpack.c.l.b16 %v1728
        %v1894 = vunpack.c.h.b16 %v1728
        %v1895 = vunpack.c.l.b16 %v1729
        %v1896 = vunpack.c.l.b16 %v1730
        %v1897 = vunpack.c.h.b16 %v1730
        %v1898 = vunpack.c.l.b16 %v1731
        %v1899 = vunpack.c.l.b16 %v1732
        %v1900 = vunpack.c.h.b16 %v1732
        %v1901 = vunpack.c.l.b16 %v1733
        %v1902 = vunpack.c.l.b16 %v1734
        %v1903 = vunpack.c.h.b16 %v1734
        %v1904 = vunpack.c.l.b16 %v1735
        %v1905 = vunpack.c.l.b16 %v1736
        %v1906 = vunpack.c.h.b16 %v1736
        %v1907 = vunpack.c.l.b16 %v1737
        %v1908 = vunpack.c.l.b16 %v1738
        %v1909 = vunpack.c.h.b16 %v1738
        %v1910 = vunpack.c.l.b16 %v1739
        %v1911 = vunpack.c.l.b16 %v1740
        %v1912 = vunpack.c.h.b16 %v1740
        %v1913 = vunpack.c.l.b16 %v1741
        %v1914 = vunpack.c.l.b16 %v1742
        %v1915 = vunpack.c.h.b16 %v1742
        %v1916 = vunpack.c.l.b16 %v1743
        %v1917 = vunpack.c.l.b16 %v1744
        %v1918 = vunpack.c.h.b16 %v1744
        %v1919 = vunpack.c.l.b16 %v1745
        %v1920 = vunpack.c.l.b16 %v1746
        %v1921 = vunpack.c.h.b16 %v1746
        %v1922 = vunpack.c.l.b16 %v1747
        %v1923 = vunpack.c.l.b16 %v1748
        %v1924 = vunpack.c.h.b16 %v1748
        %v1925 = vunpack.c.l.b16 %v1749
        %v1926 = vunpack.c.l.b16 %v1750
        %v1927 = vunpack.c.h.b16 %v1750
        %v1928 = vunpack.c.l.b16 %v1751
        %v1929 = vunpack.c.l.b16 %v1752
        %v1930 = vunpack.c.h.b16 %v1752
        %v1931 = vunpack.c.l.b16 %v1753
        %v1932 = vunpack.c.l.b16 %v1754
        %v1933 = vunpack.c.h.b16 %v1754
        %v1934 = vunpack.c.l.b16 %v1755
        %v1935 = vunpack.c.l.b16 %v1756
        %v1936 = vunpack.c.h.b16 %v1756
        %v1937 = vunpack.c.l.b16 %v1757
        %v1938 = vunpack.c.l.b16 %v1758
        %v1939 = vunpack.c.h.b16 %v1758
        %v1940 = vunpack.c.l.b16 %v1759
        %v1941 = vunpack.c.l.b16 %v1760
        %v1942 = vunpack.c.h.b16 %v1760
        %v1943 = vunpack.c.l.b16 %v1761
        %v1944 = vunpack.c.l.b16 %v1762
        %v1945 = vunpack.c.h.b16 %v1762
        %v1946 = vunpack.c.l.b16 %v1763
        %v1947 = vunpack.c.l.b16 %v1764
        %v1948 = vunpack.c.h.b16 %v1764
        %v1949 = vunpack.c.l.b16 %v1765
        %v1950 = vunpack.c.l.b16 %v1766
        %v1951 = vunpack.c.h.b16 %v1766
        %v1952 = vunpack.c.l.b16 %v1767
        %v1953 = vunpack.c.l.b16 %v1768
        %v1954 = vunpack.c.h.b16 %v1768
        %v1955 = vunpack.c.l.b16 %v1769
        %v1956 = vunpack.c.l.b16 %v1770
        %v1957 = vunpack.c.h.b16 %v1770
        %v1958 = vunpack.c.l.b16 %v1771
        %v1959 = vunpack.c.l.b16 %v1772
        %v1960 = vunpack.c.h.b16 %v1772
        %v1961 = vunpack.c.l.b16 %v1773
        %v1962 = vunpack.c.l.b16 %v1774
        %v1963 = vunpack.c.h.b16 %v1774
        %v1964 = vunpack.c.l.b16 %v1775
        %v1965 = vunpack.c.l.b16 %v1776
        %v1966 = vunpack.c.h.b16 %v1776
        %v1967 = vunpack.c.l.b16 %v1777
        %v1968 = vunpack.c.l.b16 %v1778
        %v1969 = vunpack.c.h.b16 %v1778
        %v1970 = vunpack.c.l.b16 %v1779
        %v1971 = vunpack.c.l.b16 %v1780
        %v1972 = vunpack.c.h.b16 %v1780
        %v1973 = vunpack.c.l.b16 %v1781
        %v1974 = vunpack.c.l.b16 %v1782
        %v1975 = vunpack.c.h.b16 %v1782
        %v1976 = vunpack.c.l.b16 %v1783
        %v1977 = vunpack.c.l.b16 %v1784
        %v1978 = vunpack.c.h.b16 %v1784
        %v1979 = vunpack.c.l.b16 %v1785
        %v1980 = vunpack.c.l.b16 %v1786
        %v1981 = vunpack.c.h.b16 %v1786
        %v1982 = vunpack.c.l.b16 %v1787
        %v1983 = vunpack.c.l.b16 %v1788
        %v1984 = vunpack.c.h.b16 %v1788
        %v1985 = vunpack.c.l.b16 %v1789
        %v1986 = vunpack.c.l.b16 %v1790
        %v1987 = vunpack.c.h.b16 %v1790
        %v1988 = vunpack.c.l.b16 %v1791
        %v1989 = vunpack.c.l.b16 %v1792
        %v1990 = vunpack.c.h.b16 %v1792
        %v1991 = vunpack.c.l.b16 %v1793
        %v1992 = vunpack.c.l.b16 %v1794
        %v1993 = vunpack.c.h.b16 %v1794
        %v1994 = vunpack.c.l.b16 %v1795
        %v1995 = vunpack.c.l.b16 %v1796
        %v1996 = vunpack.c.h.b16 %v1796
        %v1997 = vunpack.c.l.b16 %v1797
        %v1998 = vunpack.c.l.b16 %v1798
        %v1999 = vunpack.c.h.b16 %v1798
        %v2000 = vunpack.c.l.b16 %v1799
        %v2001 = vpack.c.b16 %v1896, %v1893
        %v2002 = vpack.c.b16 %v1897, %v1894
        %v2003 = vpack.c.b16 %v1898, %v1895
        %v2004 = vpack.c.b16 %v1902, %v1899
        %v2005 = vpack.c.b16 %v1903, %v1900
        %v2006 = vpack.c.b16 %v1904, %v1901
        %v2007 = vpack.c.b16 %v1908, %v1905
        %v2008 = vpack.c.b16 %v1909, %v1906
        %v2009 = vpack.c.b16 %v1910, %v1907
        %v2010 = vpack.c.b16 %v1914, %v1911
        %v2011 = vpack.c.b16 %v1915, %v1912
        %v2012 = vpack.c.b16 %v1916, %v1913
        %v2013 = vpack.c.b16 %v1920, %v1917
        %v2014 = vpack.c.b16 %v1921, %v1918
        %v2015 = vpack.c.b16 %v1922, %v1919
        %v2016 = vpack.c.b16 %v1926, %v1923
        %v2017 = vpack.c.b16 %v1927, %v1924
        %v2018 = vpack.c.b16 %v1928, %v1925
        %v2019 = vpack.c.b16 %v1932, %v1929
        %v2020 = vpack.c.b16 %v1933, %v1930
        %v2021 = vpack.c.b16 %v1934, %v1931
        %v2022 = vpack.c.b16 %v1938, %v1935
        %v2023 = vpack.c.b16 %v1939, %v1936
        %v2024 = vpack.c.b16 %v1940, %v1937
        %v2025 = vpack.c.b16 %v1944, %v1941
        %v2026 = vpack.c.b16 %v1945, %v1942
        %v2027 = vpack.c.b16 %v1946, %v1943
        %v2028 = vpack.c.b16 %v1950, %v1947
        %v2029 = vpack.c.b16 %v1951, %v1948
        %v2030 = vpack.c.b16 %v1952, %v1949
        %v2031 = vpack.c.b16 %v1956, %v1953
        %v2032 = vpack.c.b16 %v1957, %v1954
        %v2033 = vpack.c.b16 %v1958, %v1955
        %v2034 = vpack.c.b16 %v1962, %v1959
        %v2035 = vpack.c.b16 %v1963, %v1960
        %v2036 = vpack.c.b16 %v1964, %v1961
        %v2037 = vpack.c.b16 %v1968, %v1965
        %v2038 = vpack.c.b16 %v1969, %v1966
        %v2039 = vpack.c.b16 %v1970, %v1967
        %v2040 = vpack.c.b16 %v1974, %v1971
        %v2041 = vpack.c.b16 %v1975, %v1972
        %v2042 = vpack.c.b16 %v1976, %v1973
        %v2043 = vpack.c.b16 %v1980, %v1977
        %v2044 = vpack.c.b16 %v1981, %v1978
        %v2045 = vpack.c.b16 %v1982, %v1979
        %v2046 = vpack.c.b16 %v1986, %v1983
        %v2047 = vpack.c.b16 %v1987, %v1984
        %v2048 = vpack.c.b16 %v1988, %v1985
        %v2049 = vpack.c.b16 %v1992, %v1989
        %v2050 = vpack.c.b16 %v1993, %v1990
        %v2051 = vpack.c.b16 %v1994, %v1991
        %v2052 = vpack.c.b16 %v1998, %v1995
        %v2053 = vpack.c.b16 %v1999, %v1996
        %v2054 = vpack.c.b16 %v2000, %v1997
        %v2110 = vsel %vm1008, %v1804, 0
        %2112 = vmatprep.subr.bf16.mxu0 %v2023
        %2113 = vmatpush1.bf16.msra.mxu0 %v2022
        %2114 = vmatprep.subr.bf16.mxu0 %v2020
        %2115 = vmatpush1.bf16.msra.mxu0 %v2019
        %2116 = vmatprep.subr.bf16.mxu0 %v2017
        %2117 = vmatpush1.bf16.msra.mxu0 %v2016
        %2118 = vmatprep.subr.bf16.mxu0 %v2014
        %2119 = vmatpush1.bf16.msra.mxu0 %v2013
        %2120 = vmatprep.subr.bf16.mxu0 %v2011
        %2121 = vmatpush1.bf16.msra.mxu0 %v2010
        %2122 = vmatprep.subr.bf16.mxu0 %v2008
        %2123 = vmatpush1.bf16.msra.mxu0 %v2007
        %2124 = vmatprep.subr.bf16.mxu0 %v2005
        %2125 = vmatpush1.bf16.msra.mxu0 %v2004
        %2126 = vmatprep.subr.bf16.mxu0 %v2002
        %2127 = vmatpush1.bf16.msra.mxu0 %v2001
        %2128 = vmatprep.subr.bf16.mxu0 %v2047
        %2129 = vmatpush2.bf16.msra.mxu0 %v2046
        %2130 = vmatprep.subr.bf16.mxu0 %v2044
        %2131 = vmatpush2.bf16.msra.mxu0 %v2043
        %2132 = vmatprep.subr.bf16.mxu0 %v2041
        %2133 = vmatpush2.bf16.msra.mxu0 %v2040
        %2134 = vmatprep.subr.bf16.mxu0 %v2038
        %2135 = vmatpush2.bf16.msra.mxu0 %v2037
        %2136 = vmatprep.subr.bf16.mxu0 %v2035
        %2137 = vmatpush2.bf16.msra.mxu0 %v2034
        %2138 = vmatprep.subr.bf16.mxu0 %v2032
        %2139 = vmatpush2.bf16.msra.mxu0 %v2031
        %2140 = vmatprep.subr.bf16.mxu0 %v2029
        %2141 = vmatpush2.bf16.msra.mxu0 %v2028
        %2142 = vmatprep.subr.bf16.mxu0 %v2026
        %2143 = vmatpush2.bf16.msra.mxu0 %v2025
        %2144 = vmatprep.mubr.bf16.mxu0 %v1803
        %2145 = vmatmul.mubr.bf16.gmra.mxu0 %v1802
        %v2146 = vpop.f32.mrf.mxu0
        %v2147 = vadd.f32 %v1809, %v2146
        %v2148 = vpop.f32.mrf.mxu0
        %v2149 = vadd.f32 %v1813, %v2148
        %v2150 = vpop.f32.mrf.mxu0
        %v2151 = vpop.f32.mrf.mxu0
        %2152 = vdwg.mxu0
        %2153 = vmatprep.subr.bf16.mxu0 0
        %2154 = vmatpush1.bf16.msra.mxu0 0
        %2155 = vmatprep.subr.bf16.mxu0 0
        %2156 = vmatpush1.bf16.msra.mxu0 0
        %2157 = vmatprep.subr.bf16.mxu0 0
        %2158 = vmatpush1.bf16.msra.mxu0 0
        %2159 = vmatprep.subr.bf16.mxu0 0
        %2160 = vmatpush1.bf16.msra.mxu0 0
        %2161 = vmatprep.subr.bf16.mxu0 0
        %2162 = vmatpush1.bf16.msra.mxu0 0
        %2163 = vmatprep.subr.bf16.mxu0 0
        %2164 = vmatpush1.bf16.msra.mxu0 0
        %2165 = vmatprep.subr.bf16.mxu0 %v2053
        %2166 = vmatpush1.bf16.msra.mxu0 %v2052
        %2167 = vmatprep.subr.bf16.mxu0 %v2050
        %2168 = vmatpush1.bf16.msra.mxu0 %v2049
        %2169 = vmatprep.subr.bf16.mxu0 0
        %2170 = vmatpush2.bf16.msra.mxu0 0
        %2171 = vmatprep.subr.bf16.mxu0 0
        %2172 = vmatpush2.bf16.msra.mxu0 0
        %2173 = vmatprep.subr.bf16.mxu0 0
        %2174 = vmatpush2.bf16.msra.mxu0 0
        %2175 = vmatprep.subr.bf16.mxu0 0
        %2176 = vmatpush2.bf16.msra.mxu0 0
        %2177 = vmatprep.subr.bf16.mxu0 0
        %2178 = vmatpush2.bf16.msra.mxu0 0
        %2179 = vmatprep.subr.bf16.mxu0 0
        %2180 = vmatpush2.bf16.msra.mxu0 0
        %2181 = vmatprep.subr.bf16.mxu0 0
        %2182 = vmatpush2.bf16.msra.mxu0 0
        %2183 = vmatprep.subr.bf16.mxu0 0
        %2184 = vmatpush2.bf16.msra.mxu0 0
        %2185 = vmatprep.mubr.bf16.mxu0 0
        %2186 = vmatmul.mubr.bf16.gmra.mxu0 %v2110
        %v2187 = vpop.f32.mrf.mxu0
        %v2188 = vadd.f32 %v2147, %v2187
        %v2189 = vpop.f32.mrf.mxu0
        %v2190 = vadd.f32 %v2149, %v2189
        %v2191 = vpop.f32.mrf.mxu0
        %v2192 = vpop.f32.mrf.mxu0
        %2193 = vdwg.mxu0
        %2194 = vmatprep.subr.bf16.mxu0 0
        %2195 = vmatpush1.bf16.msra.mxu0 %v2024
        %2196 = vmatprep.subr.bf16.mxu0 0
        %2197 = vmatpush1.bf16.msra.mxu0 %v2021
        %2198 = vmatprep.subr.bf16.mxu0 0
        %2199 = vmatpush1.bf16.msra.mxu0 %v2018
        %2200 = vmatprep.subr.bf16.mxu0 0
        %2201 = vmatpush1.bf16.msra.mxu0 %v2015
        %2202 = vmatprep.subr.bf16.mxu0 0
        %2203 = vmatpush1.bf16.msra.mxu0 %v2012
        %2204 = vmatprep.subr.bf16.mxu0 0
        %2205 = vmatpush1.bf16.msra.mxu0 %v2009
        %2206 = vmatprep.subr.bf16.mxu0 0
        %2207 = vmatpush1.bf16.msra.mxu0 %v2006
        %2208 = vmatprep.subr.bf16.mxu0 0
        %2209 = vmatpush1.bf16.msra.mxu0 %v2003
        %2210 = vmatprep.subr.bf16.mxu0 0
        %2211 = vmatpush2.bf16.msra.mxu0 %v2048
        %2212 = vmatprep.subr.bf16.mxu0 0
        %2213 = vmatpush2.bf16.msra.mxu0 %v2045
        %2214 = vmatprep.subr.bf16.mxu0 0
        %2215 = vmatpush2.bf16.msra.mxu0 %v2042
        %2216 = vmatprep.subr.bf16.mxu0 0
        %2217 = vmatpush2.bf16.msra.mxu0 %v2039
        %2218 = vmatprep.subr.bf16.mxu0 0
        %2219 = vmatpush2.bf16.msra.mxu0 %v2036
        %2220 = vmatprep.subr.bf16.mxu0 0
        %2221 = vmatpush2.bf16.msra.mxu0 %v2033
        %2222 = vmatprep.subr.bf16.mxu0 0
        %2223 = vmatpush2.bf16.msra.mxu0 %v2030
        %2224 = vmatprep.subr.bf16.mxu0 0
        %2225 = vmatpush2.bf16.msra.mxu0 %v2027
        %2226 = vmatprep.mubr.bf16.mxu0 %v1803
        %2227 = vmatmul.mubr.bf16.gmra.mxu0 %v1802
        %v2228 = vpop.f32.mrf.mxu0
        %v2229 = vadd.f32 %v1817, %v2228
        %v2230 = vpop.f32.mrf.mxu0
        %v2231 = vpop.f32.mrf.mxu0
        %v2232 = vpop.f32.mrf.mxu0
        %2233 = vdwg.mxu0
        %2234 = vmatprep.subr.bf16.mxu0 0
        %2235 = vmatpush1.bf16.msra.mxu0 0
        %2236 = vmatprep.subr.bf16.mxu0 0
        %2237 = vmatpush1.bf16.msra.mxu0 0
        %2238 = vmatprep.subr.bf16.mxu0 0
        %2239 = vmatpush1.bf16.msra.mxu0 0
        %2240 = vmatprep.subr.bf16.mxu0 0
        %2241 = vmatpush1.bf16.msra.mxu0 0
        %2242 = vmatprep.subr.bf16.mxu0 0
        %2243 = vmatpush1.bf16.msra.mxu0 0
        %2244 = vmatprep.subr.bf16.mxu0 0
        %2245 = vmatpush1.bf16.msra.mxu0 0
        %2246 = vmatprep.subr.bf16.mxu0 0
        %2247 = vmatpush1.bf16.msra.mxu0 %v2054
        %2248 = vmatprep.subr.bf16.mxu0 0
        %2249 = vmatpush1.bf16.msra.mxu0 %v2051
        %2250 = vmatprep.subr.bf16.mxu0 0
        %2251 = vmatpush2.bf16.msra.mxu0 0
        %2252 = vmatprep.subr.bf16.mxu0 0
        %2253 = vmatpush2.bf16.msra.mxu0 0
        %2254 = vmatprep.subr.bf16.mxu0 0
        %2255 = vmatpush2.bf16.msra.mxu0 0
        %2256 = vmatprep.subr.bf16.mxu0 0
        %2257 = vmatpush2.bf16.msra.mxu0 0
        %2258 = vmatprep.subr.bf16.mxu0 0
        %2259 = vmatpush2.bf16.msra.mxu0 0
        %2260 = vmatprep.subr.bf16.mxu0 0
        %2261 = vmatpush2.bf16.msra.mxu0 0
        %2262 = vmatprep.subr.bf16.mxu0 0
        %2263 = vmatpush2.bf16.msra.mxu0 0
        %2264 = vmatprep.subr.bf16.mxu0 0
        %2265 = vmatpush2.bf16.msra.mxu0 0
        %2266 = vmatprep.mubr.bf16.mxu0 0
        %2267 = vmatmul.mubr.bf16.gmra.mxu0 %v2110
        %v2268 = vpop.f32.mrf.mxu0
        %v2269 = vadd.f32 %v2229, %v2268
        %v2270 = vpop.f32.mrf.mxu0
        %v2271 = vpop.f32.mrf.mxu0
        %v2272 = vpop.f32.mrf.mxu0
        %2273 = vdwg.mxu0
        %v2274 = vmax.f32 %v2188, 0.0
        %v2275 = vmax.f32 %v2190, 0.0
        %v2276 = vmax.f32 %v2269, 0.0
        %s2277 = scalar_lea.vmem [#allocation7], 1296
        %v2278 = vld [vmem:[%s2277] sm:$0xff]
        %v2279 = vld [vmem:[%s2277 + $0x8] sm:$0xf]
        %v2280 = vld [vmem:[%s2277 + $0xc] sm:$0xff]
        %v2281 = vld [vmem:[%s2277 + $0x14] sm:$0xf]
        %v2282 = vld [vmem:[%s2277 + $0x18] sm:$0xff]
        %v2283 = vld [vmem:[%s2277 + $0x20] sm:$0xf]
        %v2284 = vld [vmem:[%s2277 + $0x24] sm:$0xff]
        %v2285 = vld [vmem:[%s2277 + $0x2c] sm:$0xf]
        %v2286 = vld [vmem:[%s2277 + $0x30] sm:$0xff]
        %v2287 = vld [vmem:[%s2277 + $0x38] sm:$0xf]
        %v2288 = vld [vmem:[%s2277 + $0x3c] sm:$0xff]
        %v2289 = vld [vmem:[%s2277 + $0x44] sm:$0xf]
        %v2290 = vld [vmem:[%s2277 + $0x48] sm:$0xff]
        %v2291 = vld [vmem:[%s2277 + $0x50] sm:$0xf]
        %v2292 = vld [vmem:[%s2277 + $0x54] sm:$0xff]
        %v2293 = vld [vmem:[%s2277 + $0x5c] sm:$0xf]
        %v2294 = vld [vmem:[%s2277 + $0x60] sm:$0xff]
        %v2295 = vld [vmem:[%s2277 + $0x68] sm:$0xf]
        %v2296 = vld [vmem:[%s2277 + $0x6c] sm:$0xff]
        %v2297 = vld [vmem:[%s2277 + $0x74] sm:$0xf]
        %v2298 = vld [vmem:[%s2277 + $0x78] sm:$0xff]
        %v2299 = vld [vmem:[%s2277 + $0x80] sm:$0xf]
        %v2300 = vld [vmem:[%s2277 + $0x84] sm:$0xff]
        %v2301 = vld [vmem:[%s2277 + $0x8c] sm:$0xf]
        %v2302 = vld [vmem:[%s2277 + $0x90] sm:$0xff]
        %v2303 = vld [vmem:[%s2277 + $0x98] sm:$0xf]
        %v2304 = vld [vmem:[%s2277 + $0x9c] sm:$0xff]
        %v2305 = vld [vmem:[%s2277 + $0xa4] sm:$0xf]
        %v2306 = vld [vmem:[%s2277 + $0xa8] sm:$0xff]
        %v2307 = vld [vmem:[%s2277 + $0xb0] sm:$0xf]
        %v2308 = vld [vmem:[%s2277 + $0xb4] sm:$0xff]
        %v2309 = vld [vmem:[%s2277 + $0xbc] sm:$0xf]
        %v2310 = vld [vmem:[%s2277 + $0xc0] sm:$0xff]
        %v2311 = vld [vmem:[%s2277 + $0xc8] sm:$0xf]
        %v2312 = vld [vmem:[%s2277 + $0xcc] sm:$0xff]
        %v2313 = vld [vmem:[%s2277 + $0xd4] sm:$0xf]
        %v2314 = vld [vmem:[%s2277 + $0xd8] sm:$0xff]
        %v2315 = vld [vmem:[%s2277 + $0xe0] sm:$0xf]
        %v2316 = vld [vmem:[%s2277 + $0xe4] sm:$0xff]
        %v2317 = vld [vmem:[%s2277 + $0xec] sm:$0xf]
        %v2318 = vld [vmem:[%s2277 + $0xf0] sm:$0xff]
        %v2319 = vld [vmem:[%s2277 + $0xf8] sm:$0xf]
        %v2320 = vld [vmem:[%s2277 + $0xfc] sm:$0xff]
        %v2321 = vld [vmem:[%s2277 + $0x104] sm:$0xf]
        %v2322 = vld [vmem:[%s2277 + $0x108] sm:$0xff]
        %v2323 = vld [vmem:[%s2277 + $0x110] sm:$0xf]
        %v2324 = vld [vmem:[%s2277 + $0x114] sm:$0xff]
        %v2325 = vld [vmem:[%s2277 + $0x11c] sm:$0xf]
        %v2326 = vld [vmem:[%s2277 + $0x120] sm:$0xff]
        %v2327 = vld [vmem:[%s2277 + $0x128] sm:$0xf]
        %v2328 = vld [vmem:[%s2277 + $0x12c] sm:$0xff]
        %v2329 = vld [vmem:[%s2277 + $0x134] sm:$0xf]
        %v2330 = vld [vmem:[%s2277 + $0x138] sm:$0xff]
        %v2331 = vld [vmem:[%s2277 + $0x140] sm:$0xf]
        %v2332 = vld [vmem:[%s2277 + $0x144] sm:$0xff]
        %v2333 = vld [vmem:[%s2277 + $0x14c] sm:$0xf]
        %v2334 = vld [vmem:[%s2277 + $0x150] sm:$0xff]
        %v2335 = vld [vmem:[%s2277 + $0x158] sm:$0xf]
        %v2336 = vld [vmem:[%s2277 + $0x15c] sm:$0xff]
        %v2337 = vld [vmem:[%s2277 + $0x164] sm:$0xf]
        %v2338 = vld [vmem:[%s2277 + $0x168] sm:$0xff]
        %v2339 = vld [vmem:[%s2277 + $0x170] sm:$0xf]
        %v2340 = vld [vmem:[%s2277 + $0x174] sm:$0xff]
        %v2341 = vld [vmem:[%s2277 + $0x17c] sm:$0xf]
        %v2342 = vld [vmem:[%s2277 + $0x180] sm:$0xff]
        %v2343 = vld [vmem:[%s2277 + $0x188] sm:$0xf]
        %v2344 = vld [vmem:[%s2277 + $0x18c] sm:$0xff]
        %v2345 = vld [vmem:[%s2277 + $0x194] sm:$0xf]
        %v2346 = vld [vmem:[%s2277 + $0x198] sm:$0xff]
        %v2347 = vld [vmem:[%s2277 + $0x1a0] sm:$0xf]
        %v2348 = vld [vmem:[%s2277 + $0x1a4] sm:$0xff]
        %v2349 = vld [vmem:[%s2277 + $0x1ac] sm:$0xf]
        %s2350 = scalar_lea.vmem [#allocation10], 4
        %v2351 = vld [vmem:[%s2350] ss:$8 sm:$0x7]
        %v2352 = vpack.c.bf16 %v2274, %v2274
        %v2353 = vpack.c.bf16 %v2275, %v2275
        %v2354 = vpack.c.bf16 %v2276, %v2276
        %v2356 = vlaneseq
        %v2357 = vshrl.u32 %v2356, 7
        %v2358 = vsub.s32 0, %v2357
        %v2359 = vrot.slane %v2351, %v2358
        %v2360 = vlaneseq
        %v2361 = vshrl.u32 %v2360, 7
        %v2362 = vsub.s32 1, %v2361
        %v2363 = vrot.slane %v2351, %v2362
        %v2364 = vlaneseq
        %v2365 = vshrl.u32 %v2364, 7
        %v2366 = vsub.s32 2, %v2365
        %v2367 = vrot.slane %v2351, %v2366
        %v2443 = vunpack.c.l.b16 %v2278
        %v2444 = vunpack.c.h.b16 %v2278
        %v2445 = vunpack.c.l.b16 %v2279
        %v2446 = vunpack.c.l.b16 %v2280
        %v2447 = vunpack.c.h.b16 %v2280
        %v2448 = vunpack.c.l.b16 %v2281
        %v2449 = vunpack.c.l.b16 %v2282
        %v2450 = vunpack.c.h.b16 %v2282
        %v2451 = vunpack.c.l.b16 %v2283
        %v2452 = vunpack.c.l.b16 %v2284
        %v2453 = vunpack.c.h.b16 %v2284
        %v2454 = vunpack.c.l.b16 %v2285
        %v2455 = vunpack.c.l.b16 %v2286
        %v2456 = vunpack.c.h.b16 %v2286
        %v2457 = vunpack.c.l.b16 %v2287
        %v2458 = vunpack.c.l.b16 %v2288
        %v2459 = vunpack.c.h.b16 %v2288
        %v2460 = vunpack.c.l.b16 %v2289
        %v2461 = vunpack.c.l.b16 %v2290
        %v2462 = vunpack.c.h.b16 %v2290
        %v2463 = vunpack.c.l.b16 %v2291
        %v2464 = vunpack.c.l.b16 %v2292
        %v2465 = vunpack.c.h.b16 %v2292
        %v2466 = vunpack.c.l.b16 %v2293
        %v2467 = vunpack.c.l.b16 %v2294
        %v2468 = vunpack.c.h.b16 %v2294
        %v2469 = vunpack.c.l.b16 %v2295
        %v2470 = vunpack.c.l.b16 %v2296
        %v2471 = vunpack.c.h.b16 %v2296
        %v2472 = vunpack.c.l.b16 %v2297
        %v2473 = vunpack.c.l.b16 %v2298
        %v2474 = vunpack.c.h.b16 %v2298
        %v2475 = vunpack.c.l.b16 %v2299
        %v2476 = vunpack.c.l.b16 %v2300
        %v2477 = vunpack.c.h.b16 %v2300
        %v2478 = vunpack.c.l.b16 %v2301
        %v2479 = vunpack.c.l.b16 %v2302
        %v2480 = vunpack.c.h.b16 %v2302
        %v2481 = vunpack.c.l.b16 %v2303
        %v2482 = vunpack.c.l.b16 %v2304
        %v2483 = vunpack.c.h.b16 %v2304
        %v2484 = vunpack.c.l.b16 %v2305
        %v2485 = vunpack.c.l.b16 %v2306
        %v2486 = vunpack.c.h.b16 %v2306
        %v2487 = vunpack.c.l.b16 %v2307
        %v2488 = vunpack.c.l.b16 %v2308
        %v2489 = vunpack.c.h.b16 %v2308
        %v2490 = vunpack.c.l.b16 %v2309
        %v2491 = vunpack.c.l.b16 %v2310
        %v2492 = vunpack.c.h.b16 %v2310
        %v2493 = vunpack.c.l.b16 %v2311
        %v2494 = vunpack.c.l.b16 %v2312
        %v2495 = vunpack.c.h.b16 %v2312
        %v2496 = vunpack.c.l.b16 %v2313
        %v2497 = vunpack.c.l.b16 %v2314
        %v2498 = vunpack.c.h.b16 %v2314
        %v2499 = vunpack.c.l.b16 %v2315
        %v2500 = vunpack.c.l.b16 %v2316
        %v2501 = vunpack.c.h.b16 %v2316
        %v2502 = vunpack.c.l.b16 %v2317
        %v2503 = vunpack.c.l.b16 %v2318
        %v2504 = vunpack.c.h.b16 %v2318
        %v2505 = vunpack.c.l.b16 %v2319
        %v2506 = vunpack.c.l.b16 %v2320
        %v2507 = vunpack.c.h.b16 %v2320
        %v2508 = vunpack.c.l.b16 %v2321
        %v2509 = vunpack.c.l.b16 %v2322
        %v2510 = vunpack.c.h.b16 %v2322
        %v2511 = vunpack.c.l.b16 %v2323
        %v2512 = vunpack.c.l.b16 %v2324
        %v2513 = vunpack.c.h.b16 %v2324
        %v2514 = vunpack.c.l.b16 %v2325
        %v2515 = vunpack.c.l.b16 %v2326
        %v2516 = vunpack.c.h.b16 %v2326
        %v2517 = vunpack.c.l.b16 %v2327
        %v2518 = vunpack.c.l.b16 %v2328
        %v2519 = vunpack.c.h.b16 %v2328
        %v2520 = vunpack.c.l.b16 %v2329
        %v2521 = vunpack.c.l.b16 %v2330
        %v2522 = vunpack.c.h.b16 %v2330
        %v2523 = vunpack.c.l.b16 %v2331
        %v2524 = vunpack.c.l.b16 %v2332
        %v2525 = vunpack.c.h.b16 %v2332
        %v2526 = vunpack.c.l.b16 %v2333
        %v2527 = vunpack.c.l.b16 %v2334
        %v2528 = vunpack.c.h.b16 %v2334
        %v2529 = vunpack.c.l.b16 %v2335
        %v2530 = vunpack.c.l.b16 %v2336
        %v2531 = vunpack.c.h.b16 %v2336
        %v2532 = vunpack.c.l.b16 %v2337
        %v2533 = vunpack.c.l.b16 %v2338
        %v2534 = vunpack.c.h.b16 %v2338
        %v2535 = vunpack.c.l.b16 %v2339
        %v2536 = vunpack.c.l.b16 %v2340
        %v2537 = vunpack.c.h.b16 %v2340
        %v2538 = vunpack.c.l.b16 %v2341
        %v2539 = vunpack.c.l.b16 %v2342
        %v2540 = vunpack.c.h.b16 %v2342
        %v2541 = vunpack.c.l.b16 %v2343
        %v2542 = vunpack.c.l.b16 %v2344
        %v2543 = vunpack.c.h.b16 %v2344
        %v2544 = vunpack.c.l.b16 %v2345
        %v2545 = vunpack.c.l.b16 %v2346
        %v2546 = vunpack.c.h.b16 %v2346
        %v2547 = vunpack.c.l.b16 %v2347
        %v2548 = vunpack.c.l.b16 %v2348
        %v2549 = vunpack.c.h.b16 %v2348
        %v2550 = vunpack.c.l.b16 %v2349
        %v2551 = vpack.c.b16 %v2446, %v2443
        %v2552 = vpack.c.b16 %v2447, %v2444
        %v2553 = vpack.c.b16 %v2448, %v2445
        %v2554 = vpack.c.b16 %v2452, %v2449
        %v2555 = vpack.c.b16 %v2453, %v2450
        %v2556 = vpack.c.b16 %v2454, %v2451
        %v2557 = vpack.c.b16 %v2458, %v2455
        %v2558 = vpack.c.b16 %v2459, %v2456
        %v2559 = vpack.c.b16 %v2460, %v2457
        %v2560 = vpack.c.b16 %v2464, %v2461
        %v2561 = vpack.c.b16 %v2465, %v2462
        %v2562 = vpack.c.b16 %v2466, %v2463
        %v2563 = vpack.c.b16 %v2470, %v2467
        %v2564 = vpack.c.b16 %v2471, %v2468
        %v2565 = vpack.c.b16 %v2472, %v2469
        %v2566 = vpack.c.b16 %v2476, %v2473
        %v2567 = vpack.c.b16 %v2477, %v2474
        %v2568 = vpack.c.b16 %v2478, %v2475
        %v2569 = vpack.c.b16 %v2482, %v2479
        %v2570 = vpack.c.b16 %v2483, %v2480
        %v2571 = vpack.c.b16 %v2484, %v2481
        %v2572 = vpack.c.b16 %v2488, %v2485
        %v2573 = vpack.c.b16 %v2489, %v2486
        %v2574 = vpack.c.b16 %v2490, %v2487
        %v2575 = vpack.c.b16 %v2494, %v2491
        %v2576 = vpack.c.b16 %v2495, %v2492
        %v2577 = vpack.c.b16 %v2496, %v2493
        %v2578 = vpack.c.b16 %v2500, %v2497
        %v2579 = vpack.c.b16 %v2501, %v2498
        %v2580 = vpack.c.b16 %v2502, %v2499
        %v2581 = vpack.c.b16 %v2506, %v2503
        %v2582 = vpack.c.b16 %v2507, %v2504
        %v2583 = vpack.c.b16 %v2508, %v2505
        %v2584 = vpack.c.b16 %v2512, %v2509
        %v2585 = vpack.c.b16 %v2513, %v2510
        %v2586 = vpack.c.b16 %v2514, %v2511
        %v2587 = vpack.c.b16 %v2518, %v2515
        %v2588 = vpack.c.b16 %v2519, %v2516
        %v2589 = vpack.c.b16 %v2520, %v2517
        %v2590 = vpack.c.b16 %v2524, %v2521
        %v2591 = vpack.c.b16 %v2525, %v2522
        %v2592 = vpack.c.b16 %v2526, %v2523
        %v2593 = vpack.c.b16 %v2530, %v2527
        %v2594 = vpack.c.b16 %v2531, %v2528
        %v2595 = vpack.c.b16 %v2532, %v2529
        %v2596 = vpack.c.b16 %v2536, %v2533
        %v2597 = vpack.c.b16 %v2537, %v2534
        %v2598 = vpack.c.b16 %v2538, %v2535
        %v2599 = vpack.c.b16 %v2542, %v2539
        %v2600 = vpack.c.b16 %v2543, %v2540
        %v2601 = vpack.c.b16 %v2544, %v2541
        %v2602 = vpack.c.b16 %v2548, %v2545
        %v2603 = vpack.c.b16 %v2549, %v2546
        %v2604 = vpack.c.b16 %v2550, %v2547
        %v2660 = vsel %vm1008, %v2354, 0
        %2662 = vmatprep.subr.bf16.mxu0 %v2573
        %2663 = vmatpush1.bf16.msra.mxu0 %v2572
        %2664 = vmatprep.subr.bf16.mxu0 %v2570
        %2665 = vmatpush1.bf16.msra.mxu0 %v2569
        %2666 = vmatprep.subr.bf16.mxu0 %v2567
        %2667 = vmatpush1.bf16.msra.mxu0 %v2566
        %2668 = vmatprep.subr.bf16.mxu0 %v2564
        %2669 = vmatpush1.bf16.msra.mxu0 %v2563
        %2670 = vmatprep.subr.bf16.mxu0 %v2561
        %2671 = vmatpush1.bf16.msra.mxu0 %v2560
        %2672 = vmatprep.subr.bf16.mxu0 %v2558
        %2673 = vmatpush1.bf16.msra.mxu0 %v2557
        %2674 = vmatprep.subr.bf16.mxu0 %v2555
        %2675 = vmatpush1.bf16.msra.mxu0 %v2554
        %2676 = vmatprep.subr.bf16.mxu0 %v2552
        %2677 = vmatpush1.bf16.msra.mxu0 %v2551
        %2678 = vmatprep.subr.bf16.mxu0 %v2597
        %2679 = vmatpush2.bf16.msra.mxu0 %v2596
        %2680 = vmatprep.subr.bf16.mxu0 %v2594
        %2681 = vmatpush2.bf16.msra.mxu0 %v2593
        %2682 = vmatprep.subr.bf16.mxu0 %v2591
        %2683 = vmatpush2.bf16.msra.mxu0 %v2590
        %2684 = vmatprep.subr.bf16.mxu0 %v2588
        %2685 = vmatpush2.bf16.msra.mxu0 %v2587
        %2686 = vmatprep.subr.bf16.mxu0 %v2585
        %2687 = vmatpush2.bf16.msra.mxu0 %v2584
        %2688 = vmatprep.subr.bf16.mxu0 %v2582
        %2689 = vmatpush2.bf16.msra.mxu0 %v2581
        %2690 = vmatprep.subr.bf16.mxu0 %v2579
        %2691 = vmatpush2.bf16.msra.mxu0 %v2578
        %2692 = vmatprep.subr.bf16.mxu0 %v2576
        %2693 = vmatpush2.bf16.msra.mxu0 %v2575
        %2694 = vmatprep.mubr.bf16.mxu0 %v2353
        %2695 = vmatmul.mubr.bf16.gmra.mxu0 %v2352
        %v2696 = vpop.f32.mrf.mxu0
        %v2697 = vadd.f32 %v2359, %v2696
        %v2698 = vpop.f32.mrf.mxu0
        %v2699 = vadd.f32 %v2363, %v2698
        %v2700 = vpop.f32.mrf.mxu0
        %v2701 = vpop.f32.mrf.mxu0
        %2702 = vdwg.mxu0
        %2703 = vmatprep.subr.bf16.mxu0 0
        %2704 = vmatpush1.bf16.msra.mxu0 0
        %2705 = vmatprep.subr.bf16.mxu0 0
        %2706 = vmatpush1.bf16.msra.mxu0 0
        %2707 = vmatprep.subr.bf16.mxu0 0
        %2708 = vmatpush1.bf16.msra.mxu0 0
        %2709 = vmatprep.subr.bf16.mxu0 0
        %2710 = vmatpush1.bf16.msra.mxu0 0
        %2711 = vmatprep.subr.bf16.mxu0 0
        %2712 = vmatpush1.bf16.msra.mxu0 0
        %2713 = vmatprep.subr.bf16.mxu0 0
        %2714 = vmatpush1.bf16.msra.mxu0 0
        %2715 = vmatprep.subr.bf16.mxu0 %v2603
        %2716 = vmatpush1.bf16.msra.mxu0 %v2602
        %2717 = vmatprep.subr.bf16.mxu0 %v2600
        %2718 = vmatpush1.bf16.msra.mxu0 %v2599
        %2719 = vmatprep.subr.bf16.mxu0 0
        %2720 = vmatpush2.bf16.msra.mxu0 0
        %2721 = vmatprep.subr.bf16.mxu0 0
        %2722 = vmatpush2.bf16.msra.mxu0 0
        %2723 = vmatprep.subr.bf16.mxu0 0
        %2724 = vmatpush2.bf16.msra.mxu0 0
        %2725 = vmatprep.subr.bf16.mxu0 0
        %2726 = vmatpush2.bf16.msra.mxu0 0
        %2727 = vmatprep.subr.bf16.mxu0 0
        %2728 = vmatpush2.bf16.msra.mxu0 0
        %2729 = vmatprep.subr.bf16.mxu0 0
        %2730 = vmatpush2.bf16.msra.mxu0 0
        %2731 = vmatprep.subr.bf16.mxu0 0
        %2732 = vmatpush2.bf16.msra.mxu0 0
        %2733 = vmatprep.subr.bf16.mxu0 0
        %2734 = vmatpush2.bf16.msra.mxu0 0
        %2735 = vmatprep.mubr.bf16.mxu0 0
        %2736 = vmatmul.mubr.bf16.gmra.mxu0 %v2660
        %v2737 = vpop.f32.mrf.mxu0
        %v2738 = vadd.f32 %v2697, %v2737
        %v2739 = vpop.f32.mrf.mxu0
        %v2740 = vadd.f32 %v2699, %v2739
        %v2741 = vpop.f32.mrf.mxu0
        %v2742 = vpop.f32.mrf.mxu0
        %2743 = vdwg.mxu0
        %2744 = vmatprep.subr.bf16.mxu0 0
        %2745 = vmatpush1.bf16.msra.mxu0 %v2574
        %2746 = vmatprep.subr.bf16.mxu0 0
        %2747 = vmatpush1.bf16.msra.mxu0 %v2571
        %2748 = vmatprep.subr.bf16.mxu0 0
        %2749 = vmatpush1.bf16.msra.mxu0 %v2568
        %2750 = vmatprep.subr.bf16.mxu0 0
        %2751 = vmatpush1.bf16.msra.mxu0 %v2565
        %2752 = vmatprep.subr.bf16.mxu0 0
        %2753 = vmatpush1.bf16.msra.mxu0 %v2562
        %2754 = vmatprep.subr.bf16.mxu0 0
        %2755 = vmatpush1.bf16.msra.mxu0 %v2559
        %2756 = vmatprep.subr.bf16.mxu0 0
        %2757 = vmatpush1.bf16.msra.mxu0 %v2556
        %2758 = vmatprep.subr.bf16.mxu0 0
        %2759 = vmatpush1.bf16.msra.mxu0 %v2553
        %2760 = vmatprep.subr.bf16.mxu0 0
        %2761 = vmatpush2.bf16.msra.mxu0 %v2598
        %2762 = vmatprep.subr.bf16.mxu0 0
        %2763 = vmatpush2.bf16.msra.mxu0 %v2595
        %2764 = vmatprep.subr.bf16.mxu0 0
        %2765 = vmatpush2.bf16.msra.mxu0 %v2592
        %2766 = vmatprep.subr.bf16.mxu0 0
        %2767 = vmatpush2.bf16.msra.mxu0 %v2589
        %2768 = vmatprep.subr.bf16.mxu0 0
        %2769 = vmatpush2.bf16.msra.mxu0 %v2586
        %2770 = vmatprep.subr.bf16.mxu0 0
        %2771 = vmatpush2.bf16.msra.mxu0 %v2583
        %2772 = vmatprep.subr.bf16.mxu0 0
        %2773 = vmatpush2.bf16.msra.mxu0 %v2580
        %2774 = vmatprep.subr.bf16.mxu0 0
        %2775 = vmatpush2.bf16.msra.mxu0 %v2577
        %2776 = vmatprep.mubr.bf16.mxu0 %v2353
        %2777 = vmatmul.mubr.bf16.gmra.mxu0 %v2352
        %v2778 = vpop.f32.mrf.mxu0
        %v2779 = vadd.f32 %v2367, %v2778
        %v2780 = vpop.f32.mrf.mxu0
        %v2781 = vpop.f32.mrf.mxu0
        %v2782 = vpop.f32.mrf.mxu0
        %2783 = vdwg.mxu0
        %2784 = vmatprep.subr.bf16.mxu0 0
        %2785 = vmatpush1.bf16.msra.mxu0 0
        %2786 = vmatprep.subr.bf16.mxu0 0
        %2787 = vmatpush1.bf16.msra.mxu0 0
        %2788 = vmatprep.subr.bf16.mxu0 0
        %2789 = vmatpush1.bf16.msra.mxu0 0
        %2790 = vmatprep.subr.bf16.mxu0 0
        %2791 = vmatpush1.bf16.msra.mxu0 0
        %2792 = vmatprep.subr.bf16.mxu0 0
        %2793 = vmatpush1.bf16.msra.mxu0 0
        %2794 = vmatprep.subr.bf16.mxu0 0
        %2795 = vmatpush1.bf16.msra.mxu0 0
        %2796 = vmatprep.subr.bf16.mxu0 0
        %2797 = vmatpush1.bf16.msra.mxu0 %v2604
        %2798 = vmatprep.subr.bf16.mxu0 0
        %2799 = vmatpush1.bf16.msra.mxu0 %v2601
        %2800 = vmatprep.subr.bf16.mxu0 0
        %2801 = vmatpush2.bf16.msra.mxu0 0
        %2802 = vmatprep.subr.bf16.mxu0 0
        %2803 = vmatpush2.bf16.msra.mxu0 0
        %2804 = vmatprep.subr.bf16.mxu0 0
        %2805 = vmatpush2.bf16.msra.mxu0 0
        %2806 = vmatprep.subr.bf16.mxu0 0
        %2807 = vmatpush2.bf16.msra.mxu0 0
        %2808 = vmatprep.subr.bf16.mxu0 0
        %2809 = vmatpush2.bf16.msra.mxu0 0
        %2810 = vmatprep.subr.bf16.mxu0 0
        %2811 = vmatpush2.bf16.msra.mxu0 0
        %2812 = vmatprep.subr.bf16.mxu0 0
        %2813 = vmatpush2.bf16.msra.mxu0 0
        %2814 = vmatprep.subr.bf16.mxu0 0
        %2815 = vmatpush2.bf16.msra.mxu0 0
        %2816 = vmatprep.mubr.bf16.mxu0 0
        %2817 = vmatmul.mubr.bf16.gmra.mxu0 %v2660
        %v2818 = vpop.f32.mrf.mxu0
        %v2819 = vadd.f32 %v2779, %v2818
        %v2820 = vpop.f32.mrf.mxu0
        %v2821 = vpop.f32.mrf.mxu0
        %v2822 = vpop.f32.mrf.mxu0
        %2823 = vdwg.mxu0
        %v2824 = vmax.f32 %v2738, 0.0
        %v2825 = vmax.f32 %v2740, 0.0
        %v2826 = vmax.f32 %v2819, 0.0
        %v2827 = vld [vmem:[#allocation8] sm:$0xf]
        %v2828 = vld [vmem:[#allocation8 + $0x4] sm:$0xf]
        %v2829 = vld [vmem:[#allocation8 + $0x8] sm:$0xf]
        %v2830 = vld [vmem:[#allocation8 + $0xc] sm:$0xf]
        %v2831 = vld [vmem:[#allocation8 + $0x10] sm:$0xf]
        %v2832 = vld [vmem:[#allocation8 + $0x14] sm:$0xf]
        %v2833 = vld [vmem:[#allocation8 + $0x18] sm:$0xf]
        %v2834 = vld [vmem:[#allocation8 + $0x1c] sm:$0xf]
        %v2835 = vld [vmem:[#allocation8 + $0x20] sm:$0xf]
        %v2836 = vld [vmem:[#allocation8 + $0x24] sm:$0xf]
        %v2837 = vld [vmem:[#allocation8 + $0x28] sm:$0xf]
        %v2838 = vld [vmem:[#allocation8 + $0x2c] sm:$0xf]
        %v2839 = vld [vmem:[#allocation8 + $0x30] sm:$0xf]
        %v2840 = vld [vmem:[#allocation8 + $0x34] sm:$0xf]
        %v2841 = vld [vmem:[#allocation8 + $0x38] sm:$0xf]
        %v2842 = vld [vmem:[#allocation8 + $0x3c] sm:$0xf]
        %v2843 = vld [vmem:[#allocation8 + $0x40] sm:$0xf]
        %v2844 = vld [vmem:[#allocation8 + $0x44] sm:$0xf]
        %v2845 = vld [vmem:[#allocation8 + $0x48] sm:$0xf]
        %v2846 = vld [vmem:[#allocation8 + $0x4c] sm:$0xf]
        %v2847 = vld [vmem:[#allocation8 + $0x50] sm:$0xf]
        %v2848 = vld [vmem:[#allocation8 + $0x54] sm:$0xf]
        %v2849 = vld [vmem:[#allocation8 + $0x58] sm:$0xf]
        %v2850 = vld [vmem:[#allocation8 + $0x5c] sm:$0xf]
        %v2851 = vld [vmem:[#allocation8 + $0x60] sm:$0xf]
        %v2852 = vld [vmem:[#allocation8 + $0x64] sm:$0xf]
        %v2853 = vld [vmem:[#allocation8 + $0x68] sm:$0xf]
        %v2854 = vld [vmem:[#allocation8 + $0x6c] sm:$0xf]
        %v2855 = vld [vmem:[#allocation8 + $0x70] sm:$0xf]
        %v2856 = vld [vmem:[#allocation8 + $0x74] sm:$0xf]
        %v2857 = vld [vmem:[#allocation8 + $0x78] sm:$0xf]
        %v2858 = vld [vmem:[#allocation8 + $0x7c] sm:$0xf]
        %v2859 = vld [vmem:[#allocation8 + $0x80] sm:$0xf]
        %v2860 = vld [vmem:[#allocation8 + $0x84] sm:$0xf]
        %v2861 = vld [vmem:[#allocation8 + $0x88] sm:$0xf]
        %v2862 = vld [vmem:[#allocation8 + $0x8c] sm:$0xf]
        %v2863 = vld [vmem:[#allocation10 + $0x5] ss:$0 sm:$0xff]
        %v2864 = vpack.c.bf16 %v2824, %v2824
        %v2865 = vpack.c.bf16 %v2825, %v2825
        %v2866 = vpack.c.bf16 %v2826, %v2826
        %v2903 = vunpack.c.l.b16 %v2827
        %v2904 = vunpack.c.l.b16 %v2828
        %v2905 = vunpack.c.l.b16 %v2829
        %v2906 = vunpack.c.l.b16 %v2830
        %v2907 = vunpack.c.l.b16 %v2831
        %v2908 = vunpack.c.l.b16 %v2832
        %v2909 = vunpack.c.l.b16 %v2833
        %v2910 = vunpack.c.l.b16 %v2834
        %v2911 = vunpack.c.l.b16 %v2835
        %v2912 = vunpack.c.l.b16 %v2836
        %v2913 = vunpack.c.l.b16 %v2837
        %v2914 = vunpack.c.l.b16 %v2838
        %v2915 = vunpack.c.l.b16 %v2839
        %v2916 = vunpack.c.l.b16 %v2840
        %v2917 = vunpack.c.l.b16 %v2841
        %v2918 = vunpack.c.l.b16 %v2842
        %v2919 = vunpack.c.l.b16 %v2843
        %v2920 = vunpack.c.l.b16 %v2844
        %v2921 = vunpack.c.l.b16 %v2845
        %v2922 = vunpack.c.l.b16 %v2846
        %v2923 = vunpack.c.l.b16 %v2847
        %v2924 = vunpack.c.l.b16 %v2848
        %v2925 = vunpack.c.l.b16 %v2849
        %v2926 = vunpack.c.l.b16 %v2850
        %v2927 = vunpack.c.l.b16 %v2851
        %v2928 = vunpack.c.l.b16 %v2852
        %v2929 = vunpack.c.l.b16 %v2853
        %v2930 = vunpack.c.l.b16 %v2854
        %v2931 = vunpack.c.l.b16 %v2855
        %v2932 = vunpack.c.l.b16 %v2856
        %v2933 = vunpack.c.l.b16 %v2857
        %v2934 = vunpack.c.l.b16 %v2858
        %v2935 = vunpack.c.l.b16 %v2859
        %v2936 = vunpack.c.l.b16 %v2860
        %v2937 = vunpack.c.l.b16 %v2861
        %v2938 = vunpack.c.l.b16 %v2862
        %v2939 = vpack.c.b16 %v2904, %v2903
        %v2940 = vpack.c.b16 %v2906, %v2905
        %v2941 = vpack.c.b16 %v2908, %v2907
        %v2942 = vpack.c.b16 %v2910, %v2909
        %v2943 = vpack.c.b16 %v2912, %v2911
        %v2944 = vpack.c.b16 %v2914, %v2913
        %v2945 = vpack.c.b16 %v2916, %v2915
        %v2946 = vpack.c.b16 %v2918, %v2917
        %v2947 = vpack.c.b16 %v2920, %v2919
        %v2948 = vpack.c.b16 %v2922, %v2921
        %v2949 = vpack.c.b16 %v2924, %v2923
        %v2950 = vpack.c.b16 %v2926, %v2925
        %v2951 = vpack.c.b16 %v2928, %v2927
        %v2952 = vpack.c.b16 %v2930, %v2929
        %v2953 = vpack.c.b16 %v2932, %v2931
        %v2954 = vpack.c.b16 %v2934, %v2933
        %v2955 = vpack.c.b16 %v2936, %v2935
        %v2956 = vpack.c.b16 %v2938, %v2937
        %v2976 = vsel %vm1008, %v2866, 0
        %2978 = vmatprep.subr.bf16.mxu0 0
        %2979 = vmatpush1.bf16.msra.mxu0 %v2946
        %2980 = vmatprep.subr.bf16.mxu0 0
        %2981 = vmatpush1.bf16.msra.mxu0 %v2945
        %2982 = vmatprep.subr.bf16.mxu0 0
        %2983 = vmatpush1.bf16.msra.mxu0 %v2944
        %2984 = vmatprep.subr.bf16.mxu0 0
        %2985 = vmatpush1.bf16.msra.mxu0 %v2943
        %2986 = vmatprep.subr.bf16.mxu0 0
        %2987 = vmatpush1.bf16.msra.mxu0 %v2942
        %2988 = vmatprep.subr.bf16.mxu0 0
        %2989 = vmatpush1.bf16.msra.mxu0 %v2941
        %2990 = vmatprep.subr.bf16.mxu0 0
        %2991 = vmatpush1.bf16.msra.mxu0 %v2940
        %2992 = vmatprep.subr.bf16.mxu0 0
        %2993 = vmatpush1.bf16.msra.mxu0 %v2939
        %2994 = vmatprep.subr.bf16.mxu0 0
        %2995 = vmatpush2.bf16.msra.mxu0 %v2954
        %2996 = vmatprep.subr.bf16.mxu0 0
        %2997 = vmatpush2.bf16.msra.mxu0 %v2953
        %2998 = vmatprep.subr.bf16.mxu0 0
        %2999 = vmatpush2.bf16.msra.mxu0 %v2952
        %3000 = vmatprep.subr.bf16.mxu0 0
        %3001 = vmatpush2.bf16.msra.mxu0 %v2951
        %3002 = vmatprep.subr.bf16.mxu0 0
        %3003 = vmatpush2.bf16.msra.mxu0 %v2950
        %3004 = vmatprep.subr.bf16.mxu0 0
        %3005 = vmatpush2.bf16.msra.mxu0 %v2949
        %3006 = vmatprep.subr.bf16.mxu0 0
        %3007 = vmatpush2.bf16.msra.mxu0 %v2948
        %3008 = vmatprep.subr.bf16.mxu0 0
        %3009 = vmatpush2.bf16.msra.mxu0 %v2947
        %3010 = vmatprep.mubr.bf16.mxu0 %v2865
        %3011 = vmatmul.mubr.bf16.gmra.mxu0 %v2864
        %v3012 = vpop.f32.mrf.mxu0
        %v3013 = vadd.f32 %v2863, %v3012
        %v3014 = vpop.f32.mrf.mxu0
        %v3015 = vpop.f32.mrf.mxu0
        %v3016 = vpop.f32.mrf.mxu0
        %3017 = vdwg.mxu0
        %3018 = vmatprep.subr.bf16.mxu0 0
        %3019 = vmatpush1.bf16.msra.mxu0 0
        %3020 = vmatprep.subr.bf16.mxu0 0
        %3021 = vmatpush1.bf16.msra.mxu0 0
        %3022 = vmatprep.subr.bf16.mxu0 0
        %3023 = vmatpush1.bf16.msra.mxu0 0
        %3024 = vmatprep.subr.bf16.mxu0 0
        %3025 = vmatpush1.bf16.msra.mxu0 0
        %3026 = vmatprep.subr.bf16.mxu0 0
        %3027 = vmatpush1.bf16.msra.mxu0 0
        %3028 = vmatprep.subr.bf16.mxu0 0
        %3029 = vmatpush1.bf16.msra.mxu0 0
        %3030 = vmatprep.subr.bf16.mxu0 0
        %3031 = vmatpush1.bf16.msra.mxu0 %v2956
        %3032 = vmatprep.subr.bf16.mxu0 0
        %3033 = vmatpush1.bf16.msra.mxu0 %v2955
        %3034 = vmatprep.subr.bf16.mxu0 0
        %3035 = vmatpush2.bf16.msra.mxu0 0
        %3036 = vmatprep.subr.bf16.mxu0 0
        %3037 = vmatpush2.bf16.msra.mxu0 0
        %3038 = vmatprep.subr.bf16.mxu0 0
        %3039 = vmatpush2.bf16.msra.mxu0 0
        %3040 = vmatprep.subr.bf16.mxu0 0
        %3041 = vmatpush2.bf16.msra.mxu0 0
        %3042 = vmatprep.subr.bf16.mxu0 0
        %3043 = vmatpush2.bf16.msra.mxu0 0
        %3044 = vmatprep.subr.bf16.mxu0 0
        %3045 = vmatpush2.bf16.msra.mxu0 0
        %3046 = vmatprep.subr.bf16.mxu0 0
        %3047 = vmatpush2.bf16.msra.mxu0 0
        %3048 = vmatprep.subr.bf16.mxu0 0
        %3049 = vmatpush2.bf16.msra.mxu0 0
        %3050 = vmatprep.mubr.bf16.mxu0 0
        %3051 = vmatmul.mubr.bf16.gmra.mxu0 %v2976
        %v3052 = vpop.f32.mrf.mxu0
        %v3053 = vadd.f32 %v3013, %v3052
        %v3054 = vpop.f32.mrf.mxu0
        %v3055 = vpop.f32.mrf.mxu0
        %v3056 = vpop.f32.mrf.mxu0
        %3057 = vdwg.mxu0
        %v3058 = vmax.f32 %v3053, 0.0
        %v3059 = vld [vmem:[#allocation8 + $0x90] sm:$0xf]
        %v3060 = vld [vmem:[#allocation8 + $0x94] sm:$0xf]
        %v3061 = vld [vmem:[#allocation8 + $0x98] sm:$0xf]
        %v3062 = vld [vmem:[#allocation8 + $0x9c] sm:$0xf]
        %v3063 = vld [vmem:[#allocation8 + $0xa0] sm:$0xf]
        %v3064 = vld [vmem:[#allocation8 + $0xa4] sm:$0xf]
        %v3065 = vld [vmem:[#allocation8 + $0xa8] sm:$0xf]
        %v3066 = vld [vmem:[#allocation8 + $0xac] sm:$0xf]
        %v3067 = vld [vmem:[#allocation8 + $0xb0] sm:$0xf]
        %v3068 = vld [vmem:[#allocation8 + $0xb4] sm:$0xf]
        %v3069 = vld [vmem:[#allocation8 + $0xb8] sm:$0xf]
        %v3070 = vld [vmem:[#allocation8 + $0xbc] sm:$0xf]
        %v3071 = vld [vmem:[#allocation8 + $0xc0] sm:$0xf]
        %v3072 = vld [vmem:[#allocation8 + $0xc4] sm:$0xf]
        %v3073 = vld [vmem:[#allocation8 + $0xc8] sm:$0xf]
        %v3074 = vld [vmem:[#allocation8 + $0xcc] sm:$0xf]
        %v3075 = vld [vmem:[#allocation10 + $0x6] ss:$0 sm:$0xff]
        %v3076 = vpack.c.bf16 %v3058, %v3058
        %v3093 = vunpack.c.l.b16 %v3059
        %v3094 = vunpack.c.l.b16 %v3060
        %v3095 = vunpack.c.l.b16 %v3061
        %v3096 = vunpack.c.l.b16 %v3062
        %v3097 = vunpack.c.l.b16 %v3063
        %v3098 = vunpack.c.l.b16 %v3064
        %v3099 = vunpack.c.l.b16 %v3065
        %v3100 = vunpack.c.l.b16 %v3066
        %v3101 = vunpack.c.l.b16 %v3067
        %v3102 = vunpack.c.l.b16 %v3068
        %v3103 = vunpack.c.l.b16 %v3069
        %v3104 = vunpack.c.l.b16 %v3070
        %v3105 = vunpack.c.l.b16 %v3071
        %v3106 = vunpack.c.l.b16 %v3072
        %v3107 = vunpack.c.l.b16 %v3073
        %v3108 = vunpack.c.l.b16 %v3074
        %v3109 = vpack.c.b16 %v3094, %v3093
        %v3110 = vpack.c.b16 %v3096, %v3095
        %v3111 = vpack.c.b16 %v3098, %v3097
        %v3112 = vpack.c.b16 %v3100, %v3099
        %v3113 = vpack.c.b16 %v3102, %v3101
        %v3114 = vpack.c.b16 %v3104, %v3103
        %v3115 = vpack.c.b16 %v3106, %v3105
        %v3116 = vpack.c.b16 %v3108, %v3107
        %3125 = vmatprep.subr.bf16.mxu0 0
        %3126 = vmatpush1.bf16.msra.mxu0 %v3116
        %3127 = vmatprep.subr.bf16.mxu0 0
        %3128 = vmatpush1.bf16.msra.mxu0 %v3115
        %3129 = vmatprep.subr.bf16.mxu0 0
        %3130 = vmatpush1.bf16.msra.mxu0 %v3114
        %3131 = vmatprep.subr.bf16.mxu0 0
        %3132 = vmatpush1.bf16.msra.mxu0 %v3113
        %3133 = vmatprep.subr.bf16.mxu0 0
        %3134 = vmatpush1.bf16.msra.mxu0 %v3112
        %3135 = vmatprep.subr.bf16.mxu0 0
        %3136 = vmatpush1.bf16.msra.mxu0 %v3111
        %3137 = vmatprep.subr.bf16.mxu0 0
        %3138 = vmatpush1.bf16.msra.mxu0 %v3110
        %3139 = vmatprep.subr.bf16.mxu0 0
        %3140 = vmatpush1.bf16.msra.mxu0 %v3109
        %3141 = vmatprep.subr.bf16.mxu0 0
        %3142 = vmatpush2.bf16.msra.mxu0 0
        %3143 = vmatprep.subr.bf16.mxu0 0
        %3144 = vmatpush2.bf16.msra.mxu0 0
        %3145 = vmatprep.subr.bf16.mxu0 0
        %3146 = vmatpush2.bf16.msra.mxu0 0
        %3147 = vmatprep.subr.bf16.mxu0 0
        %3148 = vmatpush2.bf16.msra.mxu0 0
        %3149 = vmatprep.subr.bf16.mxu0 0
        %3150 = vmatpush2.bf16.msra.mxu0 0
        %3151 = vmatprep.subr.bf16.mxu0 0
        %3152 = vmatpush2.bf16.msra.mxu0 0
        %3153 = vmatprep.subr.bf16.mxu0 0
        %3154 = vmatpush2.bf16.msra.mxu0 0
        %3155 = vmatprep.subr.bf16.mxu0 0
        %3156 = vmatpush2.bf16.msra.mxu0 0
        %3157 = vmatprep.mubr.bf16.mxu0 0
        %3158 = vmatmul.mubr.bf16.gmra.mxu0 %v3076
        %v3159 = vpop.f32.mrf.mxu0
        %v3160 = vadd.f32 %v3075, %v3159
        %v3161 = vpop.f32.mrf.mxu0
        %v3162 = vpop.f32.mrf.mxu0
        %v3163 = vpop.f32.mrf.mxu0
        %3164 = vdwg.mxu0
        %3165 = vst [vmem:[%s296] sm:$0xff] %v3160
        %s3166 = sand.u32 %s142, 1
        %s3167 = scalar_lea.sflag [#allocation4], %s3166
        %s3168 = sand.u32 %s142, 1
        %s3169 = smul.addr %s3168, 8
        %s3170 = scalar_lea.vmem [#allocation11], %s3169
        // Predicated region
        $region61: #{tpu_custom_call.1} parent=39 // pred_check
          %p3171 = pneg %p152
        $region62: #{tpu_custom_call.1} parent=39 // pred_check_branch
          %3173 = sbr.rel (%p3171) target = $region64
        $region63: #{tpu_custom_call.1} parent=39 // pred_region
          %s3175 = ssub.s32 128, 128
          %3176 = vsyncadd %s3167, %s3175
          %s3177 = smul.addr %s24, 128
          %s3178 = scalar_lea.hbm %s5, %s3177
          %s3180 = sshll.u32 %s3170, 4
          %s3181 = int_to_ptr.vmem [resolvable:$true] %s3180
          %3183 = dma.vmem_to_hbm [thread:$0]  %s3181, 128, %s3178, %s3167
        $region64: #{tpu_custom_call.1} parent=39 // pred_fallthru
          _
      $region40: #{tpu_custom_call.1} parent=5 // pred_fallthru
        _
      %p3184 = scmp.le.s32.totalorder 2, %s19
      // Predicated region
      $region65: #{tpu_custom_call.1} parent=5 // pred_check
        %p3185 = pneg %p3184
      $region66: #{tpu_custom_call.1} parent=5 // pred_check_branch
        %3187 = sbr.rel (%p3185) target = $region68
      $region67: #{tpu_custom_call.1} parent=5 // pred_region
        %s3188 = ssub.s32 %s19, 2
        // Predicated region
        $region69: #{tpu_custom_call.1} parent=67 // pred_check
          %p3189 = pneg %p158
        $region70: #{tpu_custom_call.1} parent=67 // pred_check_branch
          %3191 = sbr.rel (%p3189) target = $region72
        $region71: #{tpu_custom_call.1} parent=67 // pred_region
          %s3192 = sand.u32 %s143, 1
          %s3193 = scalar_lea.sflag [#allocation4], %s3192
          %s3194 = sand.u32 %s143, 1
          %s3195 = smul.addr %s3194, 8
          %s3196 = scalar_lea.vmem [#allocation11], %s3195
          %3197 = dma.done %s3193, 128
        $region72: #{tpu_custom_call.1} parent=67 // pred_fallthru
          _
      $region68: #{tpu_custom_call.1} parent=5 // pred_fallthru
        _
    $region6: #{tpu_custom_call.1} parent=1 // loop_footer
      %s23 = sadd.s32 1, %s19
    $region7: #{tpu_custom_call.1} parent=1 // loop_footer_branch
      %18 = sbr.rel target = $region3
    $region8: #{tpu_custom_call.1} parent=1 // loop_exit
      _
    %3198 = vsyncpa [#allocation3], 1
    %s3199 = scalar_lea.sflag [#allocation3], 1
    %3200 = vsyncpa %s3199, 1
    %3201 = vsyncpa [#allocation6], 1
    %3202 = vsyncpa [#allocation9], 1
    %3203 = vsyncpa [#allocation4], 1
    %s3204 = scalar_lea.sflag [#allocation4], 1
    %3205 = vsyncpa %s3204, 1

</llo_original>
